<compile_context>
chip_gen: v7x
topology: tpu7x:2x2x1
jax: 0.10.0
libtpu: 0.0.40
codegen_flags: <defaults>
</compile_context>

<pallas_src>
import functools

import jax
import jax.numpy as jnp
from jax import lax
from jax.experimental import pallas as pl
from jax.experimental.pallas import tpu as pltpu

LANE = 128
_VMEM_BUDGET = 24 << 20        # per-step footprint budget (see _step_vmem_bytes)
_VMEM_LIMIT = 48 << 20         # scoped-VMEM limit: < 64 MiB so it is safe on v7x too


def _round_up(x, m):
    return ((x + m - 1) // m) * m


def _step_vmem_bytes(bt, seq_len, c_pad, num_heads, head_dim):
    """Conservative per-grid-step VMEM footprint estimate for a batch tile `bt`."""
    hd = num_heads * head_dim
    x_tile = bt * seq_len * c_pad * 2            # bf16 input tile (double-buffered)
    out_tile = bt * seq_len * c_pad * 2          # bf16 output tile (double-buffered)
    qkv_scr = bt * seq_len * 3 * hd * 2          # bf16 staged qkv scratch
    qkv_f32 = bt * seq_len * 3 * hd * 4          # transient f32 qkv before the cast
    pv_scr = seq_len * hd * 2                    # per-image head-output staging
    weights = (c_pad * 3 * hd + hd * c_pad) * 2 + (3 * hd + c_pad) * 4
    bias = num_heads * seq_len * seq_len * 4
    return 2 * (x_tile + out_tile) + qkv_scr + qkv_f32 + pv_scr + weights + bias


def _min_grid_steps():
    """v7x has two TensorCores sharing the ("parallel",) grid axis: keep >=2
    pipelined steps per core.  Single-TC parts (v5e/v6e) want as few big steps
    as possible, so no grid floor there."""
    try:
        kind = jax.devices()[0].device_kind.lower()
    except Exception:
        return 1
    return 4 if "v7" in kind else 1


def _pick_batch_tile(batch, seq_len, num_heads, head_dim, c_pad, min_grid):
    """Largest divisor of `batch` that fits the VMEM budget while keeping at
    least `min_grid` grid steps (floor relaxed if the batch is too small).
    TODO(synk): no remainder-tile handling -- awkward/prime B falls back to bt=1."""
    feasible = [d for d in range(1, batch + 1) if batch % d == 0 and
                _step_vmem_bytes(d, seq_len, c_pad, num_heads, head_dim) <= _VMEM_BUDGET]
    if not feasible:
        return 1
    for g in range(min_grid, 0, -1):
        cands = [d for d in feasible if batch // d >= g]
        if cands:
            return max(cands)
    return max(feasible)


def _attention_kernel(x_ref, wqkv_ref, bqkv_ref, wproj_ref, bproj_ref,
                      bias_ref, o_ref, qkv_ref, pv_ref, *,
                      batch_tile, num_heads, head_dim, seq_len, c_pad):
    BT, N, D, H = batch_tile, seq_len, head_dim, num_heads
    hd = H * D

    # ---- batch-fused QKV projection: (BT*N, c_pad) @ (c_pad, 3*hd), f32 accum ----
    x = x_ref[...].reshape(BT * N, c_pad)                       # bf16, layout-preserving
    qkv = jnp.dot(x, wqkv_ref[...], preferred_element_type=jnp.float32)
    qkv = qkv + bqkv_ref[...]                                   # (BT*N, 3*hd) f32
    # single bf16 cast + VMEM staging: bounds live ranges across the image loop
    qkv_ref[...] = qkv.reshape(BT, N, 3 * hd).astype(jnp.bfloat16)

    bproj = bproj_ref[...]                                      # (1, c_pad) f32

    def per_image(b, carry):
        qkv_b = qkv_ref[b]                                      # (N, 3*hd) bf16
        for h in range(H):                                      # static unroll over heads
            # scale already folded into the q-projection weights in the wrapper
            q = qkv_b[:, h * D:(h + 1) * D]                     # (N, D) bf16
            k = qkv_b[:, hd + h * D: hd + (h + 1) * D]          # (N, D) bf16
            v = qkv_b[:, 2 * hd + h * D: 2 * hd + (h + 1) * D]  # (N, D) bf16

            # scores = q @ k^T without materializing an explicit transpose
            s = lax.dot_general(q, k, (((1,), (1,)), ((), ())),
                                preferred_element_type=jnp.float32)
            s = s + bias_ref[h]                                 # rel. pos. bias (f32)

            # numerically-stable softmax in f32; reciprocal goes to the EUP slot
            s = s - jnp.max(s, axis=-1, keepdims=True)
            p = jnp.exp(s)
            # TODO(synk): approx EUP reciprocal; use approx=False for exact softmax parity
            p = p * pl.reciprocal(jnp.sum(p, axis=-1, keepdims=True), approx=True)

            pv = jnp.dot(p.astype(jnp.bfloat16), v,
                         preferred_element_type=jnp.float32)    # (N, D) f32
            pv_ref[:, h * D:(h + 1) * D] = pv.astype(jnp.bfloat16)

        # merged output projection: one matmul per image with contraction depth hd
        out = jnp.dot(pv_ref[...], wproj_ref[...],
                      preferred_element_type=jnp.float32)       # (N, c_pad) f32
        o_ref[b] = (out + bproj).astype(o_ref.dtype)            # lane-dense bf16 store
        return carry

    lax.fori_loop(0, BT, per_image, 0)


def prepare_params(params, *, num_heads, head_dim, window_size, dim):
    """One-time model prep: fold scale, gather rel-pos bias, pad & cast weights."""
    hd = num_heads * head_dim
    c_pad = _round_up(dim, LANE)
    scale = head_dim ** (-0.5)

    wqkv = params["wqkv"].astype(jnp.float32)                   # (dim, 3*hd)
    bqkv = params["bqkv"].astype(jnp.float32)                   # (3*hd,)
    # fold the attention scale into the q projection: (xWq + bq)*s == x(Wq*s) + bq*s
    wqkv = wqkv.at[:, :hd].multiply(scale)
    bqkv = bqkv.at[:hd].multiply(scale)
    wqkv = jnp.pad(wqkv, ((0, c_pad - dim), (0, 0))).astype(jnp.bfloat16)

    wproj = jnp.pad(params["wproj"].astype(jnp.float32),
                    ((0, 0), (0, c_pad - dim))).astype(jnp.bfloat16)   # (hd, c_pad)
    bproj = jnp.pad(params["bproj"].astype(jnp.float32),
                    (0, c_pad - dim)).reshape(1, c_pad)                # (1, c_pad) f32

    # static relative-position-bias gather hoisted out of the forward path; kept f32
    n = window_size * window_size
    rel_bias = params["rpb_table"][params["rel_index"].reshape(-1)]
    rel_bias = rel_bias.reshape(n, n, num_heads).transpose(2, 0, 1)
    rel_bias = rel_bias.astype(jnp.float32)                            # (heads, N, N)

    return {"wqkv": wqkv, "bqkv": bqkv.reshape(1, 3 * hd),
            "wproj": wproj, "bproj": bproj, "rel_bias": rel_bias}


@functools.partial(jax.jit, static_argnames=("num_heads", "head_dim", "window_size"))
def global_local_attention(x_nchw, kparams, *, num_heads, head_dim, window_size):
    B, C, Hs, Ws = x_nchw.shape
    N = Hs * Ws
    assert N == window_size * window_size, "bias broadcast requires N == window_size**2"
    hd = num_heads * head_dim
    c_pad = _round_up(C, LANE)

    # glue: NCHW -> (B, N, c_pad) bf16 (lane-dense loads, bf16 MXU operands)
    x = x_nchw.reshape(B, C, N).transpose(0, 2, 1)
    x = jnp.pad(x, ((0, 0), (0, 0), (0, c_pad - C))).astype(jnp.bfloat16)

    bt = _pick_batch_tile(B, N, num_heads, head_dim, c_pad, _min_grid_steps())
    grid = (B // bt,)

    kernel = functools.partial(
        _attention_kernel, batch_tile=bt, num_heads=num_heads,
        head_dim=head_dim, seq_len=N, c_pad=c_pad)

    out = pl.pallas_call(
        kernel,
        out_shape=jax.ShapeDtypeStruct((B, N, c_pad), jnp.bfloat16),
        grid_spec=pltpu.PrefetchScalarGridSpec(
            num_scalar_prefetch=0,
            grid=grid,
            in_specs=[
                # NOTE: if a profile shows exposed x DMA at step boundaries, add
                # pipeline_mode=pl.Buffered(3) here (weights are constant-index).
                pl.BlockSpec((bt, N, c_pad), lambda b: (b, 0, 0)),         # x (bf16)
                pl.BlockSpec((c_pad, 3 * hd), lambda b: (0, 0)),           # wqkv (bf16)
                pl.BlockSpec((1, 3 * hd), lambda b: (0, 0)),               # bqkv (f32)
                pl.BlockSpec((hd, c_pad), lambda b: (0, 0)),               # wproj (bf16)
                pl.BlockSpec((1, c_pad), lambda b: (0, 0)),                # bproj (f32)
                pl.BlockSpec((num_heads, N, N), lambda b: (0, 0, 0)),      # rel bias (f32)
            ],
            out_specs=pl.BlockSpec((bt, N, c_pad), lambda b: (b, 0, 0)),
            scratch_shapes=[
                pltpu.VMEM((bt, N, 3 * hd), jnp.bfloat16),   # staged qkv (bf16, once)
                pltpu.VMEM((N, hd), jnp.bfloat16),           # per-image head outputs
            ],
        ),
        compiler_params=pltpu.CompilerParams(
            dimension_semantics=("parallel",),
            vmem_limit_bytes=_VMEM_LIMIT),
    )(x, kparams["wqkv"], kparams["bqkv"], kparams["wproj"],
      kparams["bproj"], kparams["rel_bias"])

    # glue: (B, N, c_pad) bf16 -> (B, C, H, W) f32, dropping the channel padding
    return out[:, :, :C].astype(jnp.float32).transpose(0, 2, 1).reshape(B, C, Hs, Ws)


def make_params(key, dim, num_heads, head_dim, window_size):
    """Raw parameters mirroring the torch module (weights stored (in, out))."""
    hd = num_heads * head_dim
    k1, k2, k3, k4, k5 = jax.random.split(key, 5)
    params = {
        "wqkv": jax.random.normal(k1, (dim, 3 * hd), jnp.float32) * 0.02,
        "bqkv": jax.random.normal(k2, (3 * hd,), jnp.float32) * 0.02,
        "wproj": jax.random.normal(k3, (hd, dim), jnp.float32) * 0.02,
        "bproj": jax.random.normal(k4, (dim,), jnp.float32) * 0.02,
        "rpb_table": jax.random.normal(
            k5, ((2 * window_size - 1) * (2 * window_size - 1), num_heads),
            jnp.float32) * 0.02,
    }
    # relative_position_index (same construction as the torch module)
    coords_h = jnp.arange(window_size)
    coords_w = jnp.arange(window_size)
    coords = jnp.stack(jnp.meshgrid(coords_h, coords_w, indexing="ij"))   # (2, ws, ws)
    coords_flatten = coords.reshape(2, -1)                                # (2, ws^2)
    relative_coords = coords_flatten[:, :, None] - coords_flatten[:, None, :]
    relative_coords = relative_coords.transpose(1, 2, 0)                  # (ws^2, ws^2, 2)
    relative_coords = relative_coords.at[:, :, 0].add(window_size - 1)
    relative_coords = relative_coords.at[:, :, 1].add(window_size - 1)
    relative_coords = relative_coords.at[:, :, 0].multiply(2 * window_size - 1)
    params["rel_index"] = relative_coords.sum(-1)                         # (ws^2, ws^2)
    return params


def _reference_forward(x_nchw, params, *, num_heads, head_dim, window_size):
    """Pure-JAX f32 reference with the torch module's exact semantics."""
    B, C, H, W = x_nchw.shape
    N = H * W
    hd = num_heads * head_dim
    x = x_nchw.reshape(B, C, N).transpose(0, 2, 1)                       # (B, N, C)
    qkv = x @ params["wqkv"] + params["bqkv"]                            # (B, N, 3*hd)
    qkv = qkv.reshape(B, N, 3, num_heads, head_dim).transpose(2, 0, 3, 1, 4)
    q, k, v = qkv[0], qkv[1], qkv[2]                                     # (B, H, N, D)
    q = q * head_dim ** (-0.5)
    attn = q @ jnp.swapaxes(k, -2, -1)                                   # (B, H, N, N)
    bias = params["rpb_table"][params["rel_index"].reshape(-1)]
    bias = bias.reshape(N, N, num_heads).transpose(2, 0, 1)
    attn = jax.nn.softmax(attn + bias[None], axis=-1)
    out = (attn @ v).transpose(0, 2, 1, 3).reshape(B, N, hd)
    out = out @ params["wproj"] + params["bproj"]
    return out.transpose(0, 2, 1).reshape(B, C, H, W)


if __name__ == "__main__":
    # small deterministic config: N = window_size**2 = 64; with B=4 the batch-tile
    # picker fuses all 4 images (256 projection rows) on single-TC parts or keeps
    # 4 grid steps (>=2 per core) on dual-TC v7x.
    B, dim, num_heads, head_dim, window_size = 4, 32, 4, 16, 8
    Hs = Ws = window_size   # N = H*W = 64

    key = jax.random.PRNGKey(0)
    kx, kp = jax.random.split(key)
    x = jax.random.normal(kx, (B, dim, Hs, Ws), jnp.float32)

    raw_params = make_params(kp, dim, num_heads, head_dim, window_size)
    kparams = prepare_params(raw_params, num_heads=num_heads, head_dim=head_dim,
                             window_size=window_size, dim=dim)

    y = global_local_attention(x, kparams, num_heads=num_heads,
                               head_dim=head_dim, window_size=window_size)
    y = jax.block_until_ready(y)
    assert y.shape == (B, dim, Hs, Ws)

    # loose-tolerance sanity check vs. pure-JAX f32 reference (bf16 MXU operands)
    y_ref = _reference_forward(x, raw_params, num_heads=num_heads,
                               head_dim=head_dim, window_size=window_size)
    err = float(jnp.max(jnp.abs(y - y_ref)))
    assert err < 3e-2, f"max abs err too large: {err}"
    print("KERNEL_OK")
</pallas_src>

<mosaic_0001>
module attributes {stable_mosaic.version = 11 : i64} {
  func.func @_attention_kernel(%arg0: i32, %arg1: memref<4x64x128xbf16, #tpu.memory_space<vmem>>, %arg2: memref<128x192xbf16, #tpu.memory_space<vmem>>, %arg3: memref<1x192xf32, #tpu.memory_space<vmem>>, %arg4: memref<64x128xbf16, #tpu.memory_space<vmem>>, %arg5: memref<1x128xf32, #tpu.memory_space<vmem>>, %arg6: memref<4x64x64xf32, #tpu.memory_space<vmem>>, %arg7: memref<4x64x128xbf16, #tpu.memory_space<vmem>>, %arg8: memref<4x64x192xbf16, #tpu.memory_space<vmem>>, %arg9: memref<64x64xbf16, #tpu.memory_space<vmem>>) attributes {dimension_semantics = [#tpu.dimension_semantics<parallel>], iteration_bounds = array<i64: 1>, scalar_prefetch = 0 : i64, scratch_operands = 2 : i64, tpu.core_type = #tpu.core_type<tc>, window_params = [{transform_indices = @transform_0, window_bounds = array<i64: 4, 64, 128>}, {pipeline_mode = #tpu.pipeline_mode<synchronous>, transform_indices = @transform_1, window_bounds = array<i64: 128, 192>}, {pipeline_mode = #tpu.pipeline_mode<synchronous>, transform_indices = @transform_2, window_bounds = array<i64: 1, 192>}, {pipeline_mode = #tpu.pipeline_mode<synchronous>, transform_indices = @transform_3, window_bounds = array<i64: 64, 128>}, {pipeline_mode = #tpu.pipeline_mode<synchronous>, transform_indices = @transform_4, window_bounds = array<i64: 1, 128>}, {pipeline_mode = #tpu.pipeline_mode<synchronous>, transform_indices = @transform_5, window_bounds = array<i64: 4, 64, 64>}, {transform_indices = @transform_6, window_bounds = array<i64: 4, 64, 128>}]} {
    %c0 = arith.constant 0 : index
    %c0_0 = arith.constant 0 : index
    %c0_1 = arith.constant 0 : index
    %0 = vector.load %arg1[%c0, %c0_0, %c0_1] : memref<4x64x128xbf16, #tpu.memory_space<vmem>>, vector<4x64x128xbf16>
    %1 = vector.shape_cast %0 : vector<4x64x128xbf16> to vector<256x128xbf16>
    %c0_2 = arith.constant 0 : index
    %c0_3 = arith.constant 0 : index
    %2 = vector.load %arg2[%c0_2, %c0_3] : memref<128x192xbf16, #tpu.memory_space<vmem>>, vector<128x192xbf16>
    %cst = arith.constant dense<0.000000e+00> : vector<256x192xf32>
    %3 = tpu.matmul %1, %2, %cst {dimension_numbers = #tpu.dot_dimension_numbers<[1], [0], [0], [1], [0, 0, 1, 1], [], []>} : vector<256x128xbf16>, vector<128x192xbf16>, vector<256x192xf32> -> vector<256x192xf32>
    %c0_4 = arith.constant 0 : index
    %c0_5 = arith.constant 0 : index
    %4 = vector.load %arg3[%c0_4, %c0_5] : memref<1x192xf32, #tpu.memory_space<vmem>>, vector<1x192xf32>
    %5 = vector.broadcast %4 : vector<1x192xf32> to vector<256x192xf32>
    %6 = arith.addf %3, %5 : vector<256x192xf32>
    %7 = vector.shape_cast %6 : vector<256x192xf32> to vector<4x64x192xf32>
    %8 = arith.truncf %7 : vector<4x64x192xf32> to vector<4x64x192xbf16>
    %c0_6 = arith.constant 0 : index
    %c0_7 = arith.constant 0 : index
    %c0_8 = arith.constant 0 : index
    %9 = vector.load %arg8[%c0_6, %c0_7, %c0_8] : memref<4x64x192xbf16, #tpu.memory_space<vmem>>, vector<4x64x192xbf16>
    tpu.vector_store %arg8[%c0_6, %c0_7, %c0_8], %8 {strides = array<i32>} : memref<4x64x192xbf16, #tpu.memory_space<vmem>>, vector<4x64x192xbf16>,
    %c0_9 = arith.constant 0 : index
    %c0_10 = arith.constant 0 : index
    %10 = vector.load %arg5[%c0_9, %c0_10] : memref<1x128xf32, #tpu.memory_space<vmem>>, vector<1x128xf32>
    %c0_i32 = arith.constant 0 : i32
    %c4_i32 = arith.constant 4 : i32
    %11 = arith.addi %c0_i32, %c4_i32 : i32
    %c1_i32 = arith.constant 1 : i32
    scf.for %arg10 = %c0_i32 to %11 step %c1_i32  : i32 {
      %12 = arith.index_cast %arg10 : i32 to index
      %c0_12 = arith.constant 0 : index
      %c0_13 = arith.constant 0 : index
      %13 = vector.load %arg8[%12, %c0_12, %c0_13] : memref<4x64x192xbf16, #tpu.memory_space<vmem>>, vector<1x64x192xbf16>
      %14 = vector.shape_cast %13 : vector<1x64x192xbf16> to vector<64x192xbf16>
      %15 = vector.extract_strided_slice %14 {offsets = [0, 0], sizes = [64, 16], strides = [1, 1]} : vector<64x192xbf16> to vector<64x16xbf16>
      %16 = vector.extract_strided_slice %14 {offsets = [0, 64], sizes = [64, 16], strides = [1, 1]} : vector<64x192xbf16> to vector<64x16xbf16>
      %17 = vector.extract_strided_slice %14 {offsets = [0, 128], sizes = [64, 16], strides = [1, 1]} : vector<64x192xbf16> to vector<64x16xbf16>
      %cst_14 = arith.constant dense<0.000000e+00> : vector<64x64xf32>
      %18 = tpu.matmul %15, %16, %cst_14 {dimension_numbers = #tpu.dot_dimension_numbers<[1], [1], [0], [0], [0, 0, 1, 0], [], []>} : vector<64x16xbf16>, vector<64x16xbf16>, vector<64x64xf32> -> vector<64x64xf32>
      %c0_15 = arith.constant 0 : index
      %c0_16 = arith.constant 0 : index
      %c0_17 = arith.constant 0 : index
      %19 = vector.load %arg6[%c0_15, %c0_16, %c0_17] : memref<4x64x64xf32, #tpu.memory_space<vmem>>, vector<1x64x64xf32>
      %20 = vector.shape_cast %19 : vector<1x64x64xf32> to vector<64x64xf32>
      %21 = arith.addf %18, %20 : vector<64x64xf32>
      %cst_18 = arith.constant dense<0xFF800000> : vector<64xf32>
      %22 = vector.multi_reduction <maximumf>, %21, %cst_18 [1] : vector<64x64xf32> to vector<64xf32>
      %23 = vector.shape_cast %22 : vector<64xf32> to vector<64x1xf32>
      %24 = vector.broadcast %23 : vector<64x1xf32> to vector<64x64xf32>
      %25 = arith.subf %21, %24 : vector<64x64xf32>
      %26 = math.exp %25 : vector<64x64xf32>
      %cst_19 = arith.constant dense<0.000000e+00> : vector<64xf32>
      %27 = vector.multi_reduction <add>, %26, %cst_19 [1] : vector<64x64xf32> to vector<64xf32>
      %28 = vector.shape_cast %27 : vector<64xf32> to vector<64x1xf32>
      %29 = tpu.reciprocal %28 {approx = true} : vector<64x1xf32> -> vector<64x1xf32>
      %30 = vector.broadcast %29 : vector<64x1xf32> to vector<64x64xf32>
      %31 = arith.mulf %26, %30 : vector<64x64xf32>
      %32 = arith.truncf %31 : vector<64x64xf32> to vector<64x64xbf16>
      %cst_20 = arith.constant dense<0.000000e+00> : vector<64x16xf32>
      %33 = tpu.matmul %32, %17, %cst_20 {dimension_numbers = #tpu.dot_dimension_numbers<[1], [0], [0], [1], [0, 0, 1, 1], [], []>} : vector<64x64xbf16>, vector<64x16xbf16>, vector<64x16xf32> -> vector<64x16xf32>
      %34 = arith.truncf %33 : vector<64x16xf32> to vector<64x16xbf16>
      %c0_21 = arith.constant 0 : index
      %c0_22 = arith.constant 0 : index
      %35 = vector.load %arg9[%c0_21, %c0_22] : memref<64x64xbf16, #tpu.memory_space<vmem>>, vector<64x16xbf16>
      tpu.vector_store %arg9[%c0_21, %c0_22], %34 {strides = array<i32>} : memref<64x64xbf16, #tpu.memory_space<vmem>>, vector<64x16xbf16>,
      %36 = vector.extract_strided_slice %14 {offsets = [0, 16], sizes = [64, 16], strides = [1, 1]} : vector<64x192xbf16> to vector<64x16xbf16>
      %37 = vector.extract_strided_slice %14 {offsets = [0, 80], sizes = [64, 16], strides = [1, 1]} : vector<64x192xbf16> to vector<64x16xbf16>
      %38 = vector.extract_strided_slice %14 {offsets = [0, 144], sizes = [64, 16], strides = [1, 1]} : vector<64x192xbf16> to vector<64x16xbf16>
      %cst_23 = arith.constant dense<0.000000e+00> : vector<64x64xf32>
      %39 = tpu.matmul %36, %37, %cst_23 {dimension_numbers = #tpu.dot_dimension_numbers<[1], [1], [0], [0], [0, 0, 1, 0], [], []>} : vector<64x16xbf16>, vector<64x16xbf16>, vector<64x64xf32> -> vector<64x64xf32>
      %c1 = arith.constant 1 : index
      %c0_24 = arith.constant 0 : index
      %c0_25 = arith.constant 0 : index
      %40 = vector.load %arg6[%c1, %c0_24, %c0_25] : memref<4x64x64xf32, #tpu.memory_space<vmem>>, vector<1x64x64xf32>
      %41 = vector.shape_cast %40 : vector<1x64x64xf32> to vector<64x64xf32>
      %42 = arith.addf %39, %41 : vector<64x64xf32>
      %cst_26 = arith.constant dense<0xFF800000> : vector<64xf32>
      %43 = vector.multi_reduction <maximumf>, %42, %cst_26 [1] : vector<64x64xf32> to vector<64xf32>
      %44 = vector.shape_cast %43 : vector<64xf32> to vector<64x1xf32>
      %45 = vector.broadcast %44 : vector<64x1xf32> to vector<64x64xf32>
      %46 = arith.subf %42, %45 : vector<64x64xf32>
      %47 = math.exp %46 : vector<64x64xf32>
      %cst_27 = arith.constant dense<0.000000e+00> : vector<64xf32>
      %48 = vector.multi_reduction <add>, %47, %cst_27 [1] : vector<64x64xf32> to vector<64xf32>
      %49 = vector.shape_cast %48 : vector<64xf32> to vector<64x1xf32>
      %50 = tpu.reciprocal %49 {approx = true} : vector<64x1xf32> -> vector<64x1xf32>
      %51 = vector.broadcast %50 : vector<64x1xf32> to vector<64x64xf32>
      %52 = arith.mulf %47, %51 : vector<64x64xf32>
      %53 = arith.truncf %52 : vector<64x64xf32> to vector<64x64xbf16>
      %cst_28 = arith.constant dense<0.000000e+00> : vector<64x16xf32>
      %54 = tpu.matmul %53, %38, %cst_28 {dimension_numbers = #tpu.dot_dimension_numbers<[1], [0], [0], [1], [0, 0, 1, 1], [], []>} : vector<64x64xbf16>, vector<64x16xbf16>, vector<64x16xf32> -> vector<64x16xf32>
      %55 = arith.truncf %54 : vector<64x16xf32> to vector<64x16xbf16>
      %c0_29 = arith.constant 0 : index
      %c16 = arith.constant 16 : index
      %56 = vector.load %arg9[%c0_29, %c16] : memref<64x64xbf16, #tpu.memory_space<vmem>>, vector<64x16xbf16>
      tpu.vector_store %arg9[%c0_29, %c16], %55 {strides = array<i32>} : memref<64x64xbf16, #tpu.memory_space<vmem>>, vector<64x16xbf16>,
      %57 = vector.extract_strided_slice %14 {offsets = [0, 32], sizes = [64, 16], strides = [1, 1]} : vector<64x192xbf16> to vector<64x16xbf16>
      %58 = vector.extract_strided_slice %14 {offsets = [0, 96], sizes = [64, 16], strides = [1, 1]} : vector<64x192xbf16> to vector<64x16xbf16>
      %59 = vector.extract_strided_slice %14 {offsets = [0, 160], sizes = [64, 16], strides = [1, 1]} : vector<64x192xbf16> to vector<64x16xbf16>
      %cst_30 = arith.constant dense<0.000000e+00> : vector<64x64xf32>
      %60 = tpu.matmul %57, %58, %cst_30 {dimension_numbers = #tpu.dot_dimension_numbers<[1], [1], [0], [0], [0, 0, 1, 0], [], []>} : vector<64x16xbf16>, vector<64x16xbf16>, vector<64x64xf32> -> vector<64x64xf32>
      %c2 = arith.constant 2 : index
      %c0_31 = arith.constant 0 : index
      %c0_32 = arith.constant 0 : index
      %61 = vector.load %arg6[%c2, %c0_31, %c0_32] : memref<4x64x64xf32, #tpu.memory_space<vmem>>, vector<1x64x64xf32>
      %62 = vector.shape_cast %61 : vector<1x64x64xf32> to vector<64x64xf32>
      %63 = arith.addf %60, %62 : vector<64x64xf32>
      %cst_33 = arith.constant dense<0xFF800000> : vector<64xf32>
      %64 = vector.multi_reduction <maximumf>, %63, %cst_33 [1] : vector<64x64xf32> to vector<64xf32>
      %65 = vector.shape_cast %64 : vector<64xf32> to vector<64x1xf32>
      %66 = vector.broadcast %65 : vector<64x1xf32> to vector<64x64xf32>
      %67 = arith.subf %63, %66 : vector<64x64xf32>
      %68 = math.exp %67 : vector<64x64xf32>
      %cst_34 = arith.constant dense<0.000000e+00> : vector<64xf32>
      %69 = vector.multi_reduction <add>, %68, %cst_34 [1] : vector<64x64xf32> to vector<64xf32>
      %70 = vector.shape_cast %69 : vector<64xf32> to vector<64x1xf32>
      %71 = tpu.reciprocal %70 {approx = true} : vector<64x1xf32> -> vector<64x1xf32>
      %72 = vector.broadcast %71 : vector<64x1xf32> to vector<64x64xf32>
      %73 = arith.mulf %68, %72 : vector<64x64xf32>
      %74 = arith.truncf %73 : vector<64x64xf32> to vector<64x64xbf16>
      %cst_35 = arith.constant dense<0.000000e+00> : vector<64x16xf32>
      %75 = tpu.matmul %74, %59, %cst_35 {dimension_numbers = #tpu.dot_dimension_numbers<[1], [0], [0], [1], [0, 0, 1, 1], [], []>} : vector<64x64xbf16>, vector<64x16xbf16>, vector<64x16xf32> -> vector<64x16xf32>
      %76 = arith.truncf %75 : vector<64x16xf32> to vector<64x16xbf16>
      %c0_36 = arith.constant 0 : index
      %c32 = arith.constant 32 : index
      %77 = vector.load %arg9[%c0_36, %c32] : memref<64x64xbf16, #tpu.memory_space<vmem>>, vector<64x16xbf16>
      tpu.vector_store %arg9[%c0_36, %c32], %76 {strides = array<i32>} : memref<64x64xbf16, #tpu.memory_space<vmem>>, vector<64x16xbf16>,
      %78 = vector.extract_strided_slice %14 {offsets = [0, 48], sizes = [64, 16], strides = [1, 1]} : vector<64x192xbf16> to vector<64x16xbf16>
      %79 = vector.extract_strided_slice %14 {offsets = [0, 112], sizes = [64, 16], strides = [1, 1]} : vector<64x192xbf16> to vector<64x16xbf16>
      %80 = vector.extract_strided_slice %14 {offsets = [0, 176], sizes = [64, 16], strides = [1, 1]} : vector<64x192xbf16> to vector<64x16xbf16>
      %cst_37 = arith.constant dense<0.000000e+00> : vector<64x64xf32>
      %81 = tpu.matmul %78, %79, %cst_37 {dimension_numbers = #tpu.dot_dimension_numbers<[1], [1], [0], [0], [0, 0, 1, 0], [], []>} : vector<64x16xbf16>, vector<64x16xbf16>, vector<64x64xf32> -> vector<64x64xf32>
      %c3 = arith.constant 3 : index
      %c0_38 = arith.constant 0 : index
      %c0_39 = arith.constant 0 : index
      %82 = vector.load %arg6[%c3, %c0_38, %c0_39] : memref<4x64x64xf32, #tpu.memory_space<vmem>>, vector<1x64x64xf32>
      %83 = vector.shape_cast %82 : vector<1x64x64xf32> to vector<64x64xf32>
      %84 = arith.addf %81, %83 : vector<64x64xf32>
      %cst_40 = arith.constant dense<0xFF800000> : vector<64xf32>
      %85 = vector.multi_reduction <maximumf>, %84, %cst_40 [1] : vector<64x64xf32> to vector<64xf32>
      %86 = vector.shape_cast %85 : vector<64xf32> to vector<64x1xf32>
      %87 = vector.broadcast %86 : vector<64x1xf32> to vector<64x64xf32>
      %88 = arith.subf %84, %87 : vector<64x64xf32>
      %89 = math.exp %88 : vector<64x64xf32>
      %cst_41 = arith.constant dense<0.000000e+00> : vector<64xf32>
      %90 = vector.multi_reduction <add>, %89, %cst_41 [1] : vector<64x64xf32> to vector<64xf32>
      %91 = vector.shape_cast %90 : vector<64xf32> to vector<64x1xf32>
      %92 = tpu.reciprocal %91 {approx = true} : vector<64x1xf32> -> vector<64x1xf32>
      %93 = vector.broadcast %92 : vector<64x1xf32> to vector<64x64xf32>
      %94 = arith.mulf %89, %93 : vector<64x64xf32>
      %95 = arith.truncf %94 : vector<64x64xf32> to vector<64x64xbf16>
      %cst_42 = arith.constant dense<0.000000e+00> : vector<64x16xf32>
      %96 = tpu.matmul %95, %80, %cst_42 {dimension_numbers = #tpu.dot_dimension_numbers<[1], [0], [0], [1], [0, 0, 1, 1], [], []>} : vector<64x64xbf16>, vector<64x16xbf16>, vector<64x16xf32> -> vector<64x16xf32>
      %97 = arith.truncf %96 : vector<64x16xf32> to vector<64x16xbf16>
      %c0_43 = arith.constant 0 : index
      %c48 = arith.constant 48 : index
      %98 = vector.load %arg9[%c0_43, %c48] : memref<64x64xbf16, #tpu.memory_space<vmem>>, vector<64x16xbf16>
      tpu.vector_store %arg9[%c0_43, %c48], %97 {strides = array<i32>} : memref<64x64xbf16, #tpu.memory_space<vmem>>, vector<64x16xbf16>,
      %c0_44 = arith.constant 0 : index
      %c0_45 = arith.constant 0 : index
      %99 = vector.load %arg9[%c0_44, %c0_45] : memref<64x64xbf16, #tpu.memory_space<vmem>>, vector<64x64xbf16>
      %c0_46 = arith.constant 0 : index
      %c0_47 = arith.constant 0 : index
      %100 = vector.load %arg4[%c0_46, %c0_47] : memref<64x128xbf16, #tpu.memory_space<vmem>>, vector<64x128xbf16>
      %cst_48 = arith.constant dense<0.000000e+00> : vector<64x128xf32>
      %101 = tpu.matmul %99, %100, %cst_48 {dimension_numbers = #tpu.dot_dimension_numbers<[1], [0], [0], [1], [0, 0, 1, 1], [], []>} : vector<64x64xbf16>, vector<64x128xbf16>, vector<64x128xf32> -> vector<64x128xf32>
      %102 = vector.broadcast %10 : vector<1x128xf32> to vector<64x128xf32>
      %103 = arith.addf %101, %102 : vector<64x128xf32>
      %104 = arith.truncf %103 : vector<64x128xf32> to vector<64x128xbf16>
      %105 = arith.index_cast %arg10 : i32 to index
      %c0_49 = arith.constant 0 : index
      %c0_50 = arith.constant 0 : index
      %106 = vector.load %arg7[%105, %c0_49, %c0_50] : memref<4x64x128xbf16, #tpu.memory_space<vmem>>, vector<1x64x128xbf16>
      %107 = vector.shape_cast %106 : vector<1x64x128xbf16> to vector<64x128xbf16>
      %108 = vector.shape_cast %104 : vector<64x128xbf16> to vector<1x64x128xbf16>
      tpu.vector_store %arg7[%105, %c0_49, %c0_50], %108 {strides = array<i32>} : memref<4x64x128xbf16, #tpu.memory_space<vmem>>, vector<1x64x128xbf16>,
    }
    %c4_i32_11 = arith.constant 4 : i32
    return
  }
  func.func @transform_0(%arg0: i32) -> (i32, i32, i32) {
    %c0_i32 = arith.constant 0 : i32
    %c0_i32_0 = arith.constant 0 : i32
    %c0_i32_1 = arith.constant 0 : i32
    return %arg0, %c0_i32, %c0_i32_0 : i32, i32, i32
  }
  func.func @transform_1(%arg0: i32) -> (i32, i32) {
    %c0_i32 = arith.constant 0 : i32
    %c0_i32_0 = arith.constant 0 : i32
    %c0_i32_1 = arith.constant 0 : i32
    return %c0_i32, %c0_i32_0 : i32, i32
  }
  func.func @transform_2(%arg0: i32) -> (i32, i32) {
    %c0_i32 = arith.constant 0 : i32
    %c0_i32_0 = arith.constant 0 : i32
    %c0_i32_1 = arith.constant 0 : i32
    return %c0_i32, %c0_i32_0 : i32, i32
  }
  func.func @transform_3(%arg0: i32) -> (i32, i32) {
    %c0_i32 = arith.constant 0 : i32
    %c0_i32_0 = arith.constant 0 : i32
    %c0_i32_1 = arith.constant 0 : i32
    return %c0_i32, %c0_i32_0 : i32, i32
  }
  func.func @transform_4(%arg0: i32) -> (i32, i32) {
    %c0_i32 = arith.constant 0 : i32
    %c0_i32_0 = arith.constant 0 : i32
    %c0_i32_1 = arith.constant 0 : i32
    return %c0_i32, %c0_i32_0 : i32, i32
  }
  func.func @transform_5(%arg0: i32) -> (i32, i32, i32) {
    %c0_i32 = arith.constant 0 : i32
    %c0_i32_0 = arith.constant 0 : i32
    %c0_i32_1 = arith.constant 0 : i32
    %c0_i32_2 = arith.constant 0 : i32
    return %c0_i32, %c0_i32_0, %c0_i32_1 : i32, i32, i32
  }
  func.func @transform_6(%arg0: i32) -> (i32, i32, i32) {
    %c0_i32 = arith.constant 0 : i32
    %c0_i32_0 = arith.constant 0 : i32
    %c0_i32_1 = arith.constant 0 : i32
    return %arg0, %c0_i32, %c0_i32_0 : i32, i32, i32
  }
}

</mosaic_0001>

<llo_original>
// kernel: global_local_attention.1
$region0: #{global_local_attention.1}
  #allocation0 [shape = 'u32[]', space=smem, size = 0x4, offset = 0x4, fixed_abs, tag = 'smem constant byte address 0x4 - core index']
  #allocation1 [shape = 'u32[144,128]{1,0:T(1,128)}', space=vmem, size = 0x12000, scoped, tag = 'internal scratch']
  #allocation2 [shape = 'bf16[4,64,192]{2,1,0:T(16,128)(2,1)}', space=vmem, size = 0x20000, scoped, tag = 'scratch operand']
  #allocation3 [shape = 'bf16[64,64]{1,0:T(16,128)(2,1)}', space=vmem, size = 0x4000, scoped, tag = 'scratch operand']
  %s0 = inlined_call_operand.vmem [shape: bf16[4,64,128], index: 0, kind: input, shape index: {}]
  %s1 = inlined_call_operand.vmem [shape: bf16[128,192], index: 1, kind: input, shape index: {}]
  %s2 = inlined_call_operand.vmem [shape: f32[1,192], index: 2, kind: input, shape index: {}]
  %s3 = inlined_call_operand.vmem [shape: bf16[64,128], index: 3, kind: input, shape index: {}]
  %s4 = inlined_call_operand.vmem [shape: f32[1,128], index: 4, kind: input, shape index: {}]
  %s5 = inlined_call_operand.vmem [shape: f32[4,64,64], index: 5, kind: input, shape index: {}]
  %s6 = inlined_call_operand.vmem [shape: bf16[4,64,128], index: 6, kind: output, shape index: {}]
  %s7 = sld [smem:[#allocation0]]
  $region41: #{global_local_attention.1} parent=0
    _
  %s9 = ssub.s32 1, %s7
  %s10 = scalar_select 0, %s9, %s7
  // Predicated region
  $region2: #{global_local_attention.1} parent=0 // pred_check
    _
  $region3: #{global_local_attention.1} parent=0 // pred_check_branch
    %12 = sbr.rel (0) target = $region5
  $region4: #{global_local_attention.1} parent=0 // pred_region
    _
  $region5: #{global_local_attention.1} parent=0 // pred_fallthru
    _
  // Predicated region
  $region6: #{global_local_attention.1} parent=0 // pred_check
    _
  $region7: #{global_local_attention.1} parent=0 // pred_check_branch
    %14 = sbr.rel (0) target = $region9
  $region8: #{global_local_attention.1} parent=0 // pred_region
    _
  $region9: #{global_local_attention.1} parent=0 // pred_fallthru
    _
  // Predicated region
  $region10: #{global_local_attention.1} parent=0 // pred_check
    _
  $region11: #{global_local_attention.1} parent=0 // pred_check_branch
    %16 = sbr.rel (0) target = $region13
  $region12: #{global_local_attention.1} parent=0 // pred_region
    _
  $region13: #{global_local_attention.1} parent=0 // pred_fallthru
    _
  // Predicated region
  $region14: #{global_local_attention.1} parent=0 // pred_check
    _
  $region15: #{global_local_attention.1} parent=0 // pred_check_branch
    %18 = sbr.rel (0) target = $region17
  $region16: #{global_local_attention.1} parent=0 // pred_region
    _
  $region17: #{global_local_attention.1} parent=0 // pred_fallthru
    _
  // Predicated region
  $region18: #{global_local_attention.1} parent=0 // pred_check
    _
  $region19: #{global_local_attention.1} parent=0 // pred_check_branch
    %20 = sbr.rel (0) target = $region21
  $region20: #{global_local_attention.1} parent=0 // pred_region
    _
  $region21: #{global_local_attention.1} parent=0 // pred_fallthru
    _
  // Predicated region
  $region22: #{global_local_attention.1} parent=0 // pred_check
    _
  $region23: #{global_local_attention.1} parent=0 // pred_check_branch
    %22 = sbr.rel (0) target = $region25
  $region24: #{global_local_attention.1} parent=0 // pred_region
    _
  $region25: #{global_local_attention.1} parent=0 // pred_fallthru
    _
  %v24 = vld [vmem:[%s0] sm:$0xf]
  %v25 = vld [vmem:[%s0 + $0x4] sm:$0xf]
  %v26 = vld [vmem:[%s0 + $0x8] sm:$0xf]
  %v27 = vld [vmem:[%s0 + $0xc] sm:$0xf]
  %v28 = vld [vmem:[%s0 + $0x10] sm:$0xf]
  %v29 = vld [vmem:[%s0 + $0x14] sm:$0xf]
  %v30 = vld [vmem:[%s0 + $0x18] sm:$0xf]
  %v31 = vld [vmem:[%s0 + $0x1c] sm:$0xf]
  %v32 = vld [vmem:[%s0 + $0x20] sm:$0xf]
  %v33 = vld [vmem:[%s0 + $0x24] sm:$0xf]
  %v34 = vld [vmem:[%s0 + $0x28] sm:$0xf]
  %v35 = vld [vmem:[%s0 + $0x2c] sm:$0xf]
  %v36 = vld [vmem:[%s0 + $0x30] sm:$0xf]
  %v37 = vld [vmem:[%s0 + $0x34] sm:$0xf]
  %v38 = vld [vmem:[%s0 + $0x38] sm:$0xf]
  %v39 = vld [vmem:[%s0 + $0x3c] sm:$0xf]
  %v40 = vld [vmem:[%s0 + $0x40] sm:$0xf]
  %v41 = vld [vmem:[%s0 + $0x44] sm:$0xf]
  %v42 = vld [vmem:[%s0 + $0x48] sm:$0xf]
  %v43 = vld [vmem:[%s0 + $0x4c] sm:$0xf]
  %v44 = vld [vmem:[%s0 + $0x50] sm:$0xf]
  %v45 = vld [vmem:[%s0 + $0x54] sm:$0xf]
  %v46 = vld [vmem:[%s0 + $0x58] sm:$0xf]
  %v47 = vld [vmem:[%s0 + $0x5c] sm:$0xf]
  %v48 = vld [vmem:[%s0 + $0x60] sm:$0xf]
  %v49 = vld [vmem:[%s0 + $0x64] sm:$0xf]
  %v50 = vld [vmem:[%s0 + $0x68] sm:$0xf]
  %v51 = vld [vmem:[%s0 + $0x6c] sm:$0xf]
  %v52 = vld [vmem:[%s0 + $0x70] sm:$0xf]
  %v53 = vld [vmem:[%s0 + $0x74] sm:$0xf]
  %v54 = vld [vmem:[%s0 + $0x78] sm:$0xf]
  %v55 = vld [vmem:[%s0 + $0x7c] sm:$0xf]
  %v56 = vld [vmem:[%s1] sm:$0xff]
  %v57 = vld [vmem:[%s1 + $0x8] sm:$0xff]
  %v58 = vld [vmem:[%s1 + $0x10] sm:$0xff]
  %v59 = vld [vmem:[%s1 + $0x18] sm:$0xff]
  %v60 = vld [vmem:[%s1 + $0x20] sm:$0xff]
  %v61 = vld [vmem:[%s1 + $0x28] sm:$0xff]
  %v62 = vld [vmem:[%s1 + $0x30] sm:$0xff]
  %v63 = vld [vmem:[%s1 + $0x38] sm:$0xff]
  %v64 = vld [vmem:[%s1 + $0x40] sm:$0xff]
  %v65 = vld [vmem:[%s1 + $0x48] sm:$0xff]
  %v66 = vld [vmem:[%s1 + $0x50] sm:$0xff]
  %v67 = vld [vmem:[%s1 + $0x58] sm:$0xff]
  %v68 = vld [vmem:[%s1 + $0x60] sm:$0xff]
  %v69 = vld [vmem:[%s1 + $0x68] sm:$0xff]
  %v70 = vld [vmem:[%s1 + $0x70] sm:$0xff]
  %v71 = vld [vmem:[%s1 + $0x78] sm:$0xff]
  %v72 = vld [vmem:[%s2] sm:$0x3]
  %v74 = vlaneseq
  %v75 = vshrl.u32 %v74, 7
  %v76 = vsub.s32 0, %v75
  %v77 = vrot.slane %v72, %v76
  %v78 = vlaneseq
  %v79 = vshrl.u32 %v78, 7
  %v80 = vsub.s32 1, %v79
  %v81 = vrot.slane %v72, %v80
  %v116 = vunpack.c.l.b16 %v24
  %v117 = vunpack.c.l.b16 %v25
  %v118 = vunpack.c.l.b16 %v26
  %v119 = vunpack.c.l.b16 %v27
  %v120 = vunpack.c.l.b16 %v28
  %v121 = vunpack.c.l.b16 %v29
  %v122 = vunpack.c.l.b16 %v30
  %v123 = vunpack.c.l.b16 %v31
  %v124 = vunpack.c.l.b16 %v32
  %v125 = vunpack.c.l.b16 %v33
  %v126 = vunpack.c.l.b16 %v34
  %v127 = vunpack.c.l.b16 %v35
  %v128 = vunpack.c.l.b16 %v36
  %v129 = vunpack.c.l.b16 %v37
  %v130 = vunpack.c.l.b16 %v38
  %v131 = vunpack.c.l.b16 %v39
  %v132 = vunpack.c.l.b16 %v40
  %v133 = vunpack.c.l.b16 %v41
  %v134 = vunpack.c.l.b16 %v42
  %v135 = vunpack.c.l.b16 %v43
  %v136 = vunpack.c.l.b16 %v44
  %v137 = vunpack.c.l.b16 %v45
  %v138 = vunpack.c.l.b16 %v46
  %v139 = vunpack.c.l.b16 %v47
  %v140 = vunpack.c.l.b16 %v48
  %v141 = vunpack.c.l.b16 %v49
  %v142 = vunpack.c.l.b16 %v50
  %v143 = vunpack.c.l.b16 %v51
  %v144 = vunpack.c.l.b16 %v52
  %v145 = vunpack.c.l.b16 %v53
  %v146 = vunpack.c.l.b16 %v54
  %v147 = vunpack.c.l.b16 %v55
  %v148 = vpack.c.b16 %v117, %v116
  %v149 = vpack.c.b16 %v119, %v118
  %v150 = vpack.c.b16 %v121, %v120
  %v151 = vpack.c.b16 %v123, %v122
  %v152 = vpack.c.b16 %v125, %v124
  %v153 = vpack.c.b16 %v127, %v126
  %v154 = vpack.c.b16 %v129, %v128
  %v155 = vpack.c.b16 %v131, %v130
  %v156 = vpack.c.b16 %v133, %v132
  %v157 = vpack.c.b16 %v135, %v134
  %v158 = vpack.c.b16 %v137, %v136
  %v159 = vpack.c.b16 %v139, %v138
  %v160 = vpack.c.b16 %v141, %v140
  %v161 = vpack.c.b16 %v143, %v142
  %v162 = vpack.c.b16 %v145, %v144
  %v163 = vpack.c.b16 %v147, %v146
  %v196 = vunpack.c.l.b16 %v56
  %v197 = vunpack.c.h.b16 %v56
  %v198 = vunpack.c.l.b16 %v57
  %v199 = vunpack.c.h.b16 %v57
  %v200 = vunpack.c.l.b16 %v58
  %v201 = vunpack.c.h.b16 %v58
  %v202 = vunpack.c.l.b16 %v59
  %v203 = vunpack.c.h.b16 %v59
  %v204 = vunpack.c.l.b16 %v60
  %v205 = vunpack.c.h.b16 %v60
  %v206 = vunpack.c.l.b16 %v61
  %v207 = vunpack.c.h.b16 %v61
  %v208 = vunpack.c.l.b16 %v62
  %v209 = vunpack.c.h.b16 %v62
  %v210 = vunpack.c.l.b16 %v63
  %v211 = vunpack.c.h.b16 %v63
  %v212 = vunpack.c.l.b16 %v64
  %v213 = vunpack.c.h.b16 %v64
  %v214 = vunpack.c.l.b16 %v65
  %v215 = vunpack.c.h.b16 %v65
  %v216 = vunpack.c.l.b16 %v66
  %v217 = vunpack.c.h.b16 %v66
  %v218 = vunpack.c.l.b16 %v67
  %v219 = vunpack.c.h.b16 %v67
  %v220 = vunpack.c.l.b16 %v68
  %v221 = vunpack.c.h.b16 %v68
  %v222 = vunpack.c.l.b16 %v69
  %v223 = vunpack.c.h.b16 %v69
  %v224 = vunpack.c.l.b16 %v70
  %v225 = vunpack.c.h.b16 %v70
  %v226 = vunpack.c.l.b16 %v71
  %v227 = vunpack.c.h.b16 %v71
  %v228 = vpack.c.b16 %v198, %v196
  %v229 = vpack.c.b16 %v199, %v197
  %v230 = vpack.c.b16 %v202, %v200
  %v231 = vpack.c.b16 %v203, %v201
  %v232 = vpack.c.b16 %v206, %v204
  %v233 = vpack.c.b16 %v207, %v205
  %v234 = vpack.c.b16 %v210, %v208
  %v235 = vpack.c.b16 %v211, %v209
  %v236 = vpack.c.b16 %v214, %v212
  %v237 = vpack.c.b16 %v215, %v213
  %v238 = vpack.c.b16 %v218, %v216
  %v239 = vpack.c.b16 %v219, %v217
  %v240 = vpack.c.b16 %v222, %v220
  %v241 = vpack.c.b16 %v223, %v221
  %v242 = vpack.c.b16 %v226, %v224
  %v243 = vpack.c.b16 %v227, %v225
  %260 = vmatprep.subr.bf16.mxu0 %v229
  %261 = vmatpush1.bf16.msra.mxu0 %v228
  %262 = vmatprep.subr.bf16.mxu0 %v231
  %263 = vmatpush1.bf16.msra.mxu0 %v230
  %264 = vmatprep.subr.bf16.mxu0 %v233
  %265 = vmatpush1.bf16.msra.mxu0 %v232
  %266 = vmatprep.subr.bf16.mxu0 %v235
  %267 = vmatpush1.bf16.msra.mxu0 %v234
  %268 = vmatprep.subr.bf16.mxu0 %v237
  %269 = vmatpush1.bf16.msra.mxu0 %v236
  %270 = vmatprep.subr.bf16.mxu0 %v239
  %271 = vmatpush1.bf16.msra.mxu0 %v238
  %272 = vmatprep.subr.bf16.mxu0 %v241
  %273 = vmatpush1.bf16.msra.mxu0 %v240
  %274 = vmatprep.subr.bf16.mxu0 %v243
  %275 = vmatpush1.bf16.msra.mxu0 %v242
  %276 = vmatprep.subr.bf16.mxu0 0
  %277 = vmatpush1.bf16.msra.mxu0 0
  %278 = vmatprep.subr.bf16.mxu0 0
  %279 = vmatpush1.bf16.msra.mxu0 0
  %280 = vmatprep.subr.bf16.mxu0 0
  %281 = vmatpush1.bf16.msra.mxu0 0
  %282 = vmatprep.subr.bf16.mxu0 0
  %283 = vmatpush1.bf16.msra.mxu0 0
  %284 = vmatprep.subr.bf16.mxu0 0
  %285 = vmatpush1.bf16.msra.mxu0 0
  %286 = vmatprep.subr.bf16.mxu0 0
  %287 = vmatpush1.bf16.msra.mxu0 0
  %288 = vmatprep.subr.bf16.mxu0 0
  %289 = vmatpush1.bf16.msra.mxu0 0
  %290 = vmatprep.subr.bf16.mxu0 0
  %291 = vmatpush1.bf16.msra.mxu0 0
  %292 = vmatprep.mubr.bf16.mxu0 0
  %293 = vmatmul.mubr.bf16.gmra.mrb[0].mxu0 %v148
  %v294 = vpop.f32.mrb[0].mxu0
  %v295 = vadd.f32 %v77, %v294
  %v296 = vpop.f32.mrb[0].mxu0
  %v297 = vadd.f32 %v81, %v296
  %v298 = vpop.f32.mrb[0].mxu0
  %v299 = vadd.f32 %v77, %v298
  %v300 = vpop.f32.mrb[0].mxu0
  %v301 = vadd.f32 %v81, %v300
  %302 = vmatprep.mubr.bf16.mxu0 0
  %303 = vmatmul.mubr.bf16.gmra.mrb[0].mxu0 %v149
  %v304 = vpop.f32.mrb[0].mxu0
  %v305 = vadd.f32 %v77, %v304
  %v306 = vpop.f32.mrb[0].mxu0
  %v307 = vadd.f32 %v81, %v306
  %v308 = vpop.f32.mrb[0].mxu0
  %v309 = vadd.f32 %v77, %v308
  %v310 = vpop.f32.mrb[0].mxu0
  %v311 = vadd.f32 %v81, %v310
  %312 = vmatprep.mubr.bf16.mxu0 0
  %313 = vmatmul.mubr.bf16.gmra.mrb[0].mxu0 %v150
  %v314 = vpop.f32.mrb[0].mxu0
  %v315 = vadd.f32 %v77, %v314
  %v316 = vpop.f32.mrb[0].mxu0
  %v317 = vadd.f32 %v81, %v316
  %v318 = vpop.f32.mrb[0].mxu0
  %v319 = vadd.f32 %v77, %v318
  %v320 = vpop.f32.mrb[0].mxu0
  %v321 = vadd.f32 %v81, %v320
  %322 = vmatprep.mubr.bf16.mxu0 0
  %323 = vmatmul.mubr.bf16.gmra.mrb[0].mxu0 %v151
  %v324 = vpop.f32.mrb[0].mxu0
  %v325 = vadd.f32 %v77, %v324
  %v326 = vpop.f32.mrb[0].mxu0
  %v327 = vadd.f32 %v81, %v326
  %v328 = vpop.f32.mrb[0].mxu0
  %v329 = vadd.f32 %v77, %v328
  %v330 = vpop.f32.mrb[0].mxu0
  %v331 = vadd.f32 %v81, %v330
  %332 = vmatprep.mubr.bf16.mxu0 0
  %333 = vmatmul.mubr.bf16.gmra.mrb[0].mxu0 %v152
  %v334 = vpop.f32.mrb[0].mxu0
  %v335 = vadd.f32 %v77, %v334
  %v336 = vpop.f32.mrb[0].mxu0
  %v337 = vadd.f32 %v81, %v336
  %v338 = vpop.f32.mrb[0].mxu0
  %v339 = vadd.f32 %v77, %v338
  %v340 = vpop.f32.mrb[0].mxu0
  %v341 = vadd.f32 %v81, %v340
  %342 = vmatprep.mubr.bf16.mxu0 0
  %343 = vmatmul.mubr.bf16.gmra.mrb[0].mxu0 %v153
  %v344 = vpop.f32.mrb[0].mxu0
  %v345 = vadd.f32 %v77, %v344
  %v346 = vpop.f32.mrb[0].mxu0
  %v347 = vadd.f32 %v81, %v346
  %v348 = vpop.f32.mrb[0].mxu0
  %v349 = vadd.f32 %v77, %v348
  %v350 = vpop.f32.mrb[0].mxu0
  %v351 = vadd.f32 %v81, %v350
  %352 = vmatprep.mubr.bf16.mxu0 0
  %353 = vmatmul.mubr.bf16.gmra.mrb[0].mxu0 %v154
  %v354 = vpop.f32.mrb[0].mxu0
  %v355 = vadd.f32 %v77, %v354
  %v356 = vpop.f32.mrb[0].mxu0
  %v357 = vadd.f32 %v81, %v356
  %v358 = vpop.f32.mrb[0].mxu0
  %v359 = vadd.f32 %v77, %v358
  %v360 = vpop.f32.mrb[0].mxu0
  %v361 = vadd.f32 %v81, %v360
  %362 = vmatprep.mubr.bf16.mxu0 0
  %363 = vmatmul.mubr.bf16.gmra.mrb[0].mxu0 %v155
  %v364 = vpop.f32.mrb[0].mxu0
  %v365 = vadd.f32 %v77, %v364
  %v366 = vpop.f32.mrb[0].mxu0
  %v367 = vadd.f32 %v81, %v366
  %v368 = vpop.f32.mrb[0].mxu0
  %v369 = vadd.f32 %v77, %v368
  %v370 = vpop.f32.mrb[0].mxu0
  %v371 = vadd.f32 %v81, %v370
  %372 = vmatprep.mubr.bf16.mxu0 0
  %373 = vmatmul.mubr.bf16.gmra.mrb[0].mxu0 %v156
  %v374 = vpop.f32.mrb[0].mxu0
  %v375 = vadd.f32 %v77, %v374
  %v376 = vpop.f32.mrb[0].mxu0
  %v377 = vadd.f32 %v81, %v376
  %v378 = vpop.f32.mrb[0].mxu0
  %v379 = vadd.f32 %v77, %v378
  %v380 = vpop.f32.mrb[0].mxu0
  %v381 = vadd.f32 %v81, %v380
  %382 = vmatprep.mubr.bf16.mxu0 0
  %383 = vmatmul.mubr.bf16.gmra.mrb[0].mxu0 %v157
  %v384 = vpop.f32.mrb[0].mxu0
  %v385 = vadd.f32 %v77, %v384
  %v386 = vpop.f32.mrb[0].mxu0
  %v387 = vadd.f32 %v81, %v386
  %v388 = vpop.f32.mrb[0].mxu0
  %v389 = vadd.f32 %v77, %v388
  %v390 = vpop.f32.mrb[0].mxu0
  %v391 = vadd.f32 %v81, %v390
  %392 = vmatprep.mubr.bf16.mxu0 0
  %393 = vmatmul.mubr.bf16.gmra.mrb[0].mxu0 %v158
  %v394 = vpop.f32.mrb[0].mxu0
  %v395 = vadd.f32 %v77, %v394
  %v396 = vpop.f32.mrb[0].mxu0
  %v397 = vadd.f32 %v81, %v396
  %v398 = vpop.f32.mrb[0].mxu0
  %v399 = vadd.f32 %v77, %v398
  %v400 = vpop.f32.mrb[0].mxu0
  %v401 = vadd.f32 %v81, %v400
  %402 = vmatprep.mubr.bf16.mxu0 0
  %403 = vmatmul.mubr.bf16.gmra.mrb[0].mxu0 %v159
  %v404 = vpop.f32.mrb[0].mxu0
  %v405 = vadd.f32 %v77, %v404
  %v406 = vpop.f32.mrb[0].mxu0
  %v407 = vadd.f32 %v81, %v406
  %v408 = vpop.f32.mrb[0].mxu0
  %v409 = vadd.f32 %v77, %v408
  %v410 = vpop.f32.mrb[0].mxu0
  %v411 = vadd.f32 %v81, %v410
  %412 = vmatprep.mubr.bf16.mxu0 0
  %413 = vmatmul.mubr.bf16.gmra.mrb[0].mxu0 %v160
  %v414 = vpop.f32.mrb[0].mxu0
  %v415 = vadd.f32 %v77, %v414
  %v416 = vpop.f32.mrb[0].mxu0
  %v417 = vadd.f32 %v81, %v416
  %v418 = vpop.f32.mrb[0].mxu0
  %v419 = vadd.f32 %v77, %v418
  %v420 = vpop.f32.mrb[0].mxu0
  %v421 = vadd.f32 %v81, %v420
  %422 = vmatprep.mubr.bf16.mxu0 0
  %423 = vmatmul.mubr.bf16.gmra.mrb[0].mxu0 %v161
  %v424 = vpop.f32.mrb[0].mxu0
  %v425 = vadd.f32 %v77, %v424
  %v426 = vpop.f32.mrb[0].mxu0
  %v427 = vadd.f32 %v81, %v426
  %v428 = vpop.f32.mrb[0].mxu0
  %v429 = vadd.f32 %v77, %v428
  %v430 = vpop.f32.mrb[0].mxu0
  %v431 = vadd.f32 %v81, %v430
  %432 = vmatprep.mubr.bf16.mxu0 0
  %433 = vmatmul.mubr.bf16.gmra.mrb[0].mxu0 %v162
  %v434 = vpop.f32.mrb[0].mxu0
  %v435 = vadd.f32 %v77, %v434
  %v436 = vpop.f32.mrb[0].mxu0
  %v437 = vadd.f32 %v81, %v436
  %v438 = vpop.f32.mrb[0].mxu0
  %v439 = vadd.f32 %v77, %v438
  %v440 = vpop.f32.mrb[0].mxu0
  %v441 = vadd.f32 %v81, %v440
  %442 = vmatprep.mubr.bf16.mxu0 0
  %443 = vmatmul.mubr.bf16.gmra.mrb[0].mxu0 %v163
  %v444 = vpop.f32.mrb[0].mxu0
  %v445 = vadd.f32 %v77, %v444
  %v446 = vpop.f32.mrb[0].mxu0
  %v447 = vadd.f32 %v81, %v446
  %v448 = vpop.f32.mrb[0].mxu0
  %v449 = vadd.f32 %v77, %v448
  %v450 = vpop.f32.mrb[0].mxu0
  %v451 = vadd.f32 %v81, %v450
  %452 = vdwg.mxu0
  %v453 = vpack.c.bf16 %v299, %v295
  %v454 = vpack.c.bf16 %v301, %v297
  %v455 = vpack.c.bf16 %v309, %v305
  %v456 = vpack.c.bf16 %v311, %v307
  %v457 = vpack.c.bf16 %v319, %v315
  %v458 = vpack.c.bf16 %v321, %v317
  %v459 = vpack.c.bf16 %v329, %v325
  %v460 = vpack.c.bf16 %v331, %v327
  %v461 = vpack.c.bf16 %v339, %v335
  %v462 = vpack.c.bf16 %v341, %v337
  %v463 = vpack.c.bf16 %v349, %v345
  %v464 = vpack.c.bf16 %v351, %v347
  %v465 = vpack.c.bf16 %v359, %v355
  %v466 = vpack.c.bf16 %v361, %v357
  %v467 = vpack.c.bf16 %v369, %v365
  %v468 = vpack.c.bf16 %v371, %v367
  %v469 = vpack.c.bf16 %v379, %v375
  %v470 = vpack.c.bf16 %v381, %v377
  %v471 = vpack.c.bf16 %v389, %v385
  %v472 = vpack.c.bf16 %v391, %v387
  %v473 = vpack.c.bf16 %v399, %v395
  %v474 = vpack.c.bf16 %v401, %v397
  %v475 = vpack.c.bf16 %v409, %v405
  %v476 = vpack.c.bf16 %v411, %v407
  %v477 = vpack.c.bf16 %v419, %v415
  %v478 = vpack.c.bf16 %v421, %v417
  %v479 = vpack.c.bf16 %v429, %v425
  %v480 = vpack.c.bf16 %v431, %v427
  %v481 = vpack.c.bf16 %v439, %v435
  %v482 = vpack.c.bf16 %v441, %v437
  %v483 = vpack.c.bf16 %v449, %v445
  %v484 = vpack.c.bf16 %v451, %v447
  %485 = vst [vmem:[#allocation2] sm:$0xff] %v453
  %vm486 = vcmask 523264
  %487 = vst.msk [vmem:[#allocation2 + $0x8] sm:$0xff] %vm486, %v454
  %488 = vst [vmem:[#allocation2 + $0x10] sm:$0xff] %v455
  %489 = vst.msk [vmem:[#allocation2 + $0x18] sm:$0xff] %vm486, %v456
  %490 = vst [vmem:[#allocation2 + $0x20] sm:$0xff] %v457
  %491 = vst.msk [vmem:[#allocation2 + $0x28] sm:$0xff] %vm486, %v458
  %492 = vst [vmem:[#allocation2 + $0x30] sm:$0xff] %v459
  %493 = vst.msk [vmem:[#allocation2 + $0x38] sm:$0xff] %vm486, %v460
  %494 = vst [vmem:[#allocation2 + $0x40] sm:$0xff] %v461
  %495 = vst.msk [vmem:[#allocation2 + $0x48] sm:$0xff] %vm486, %v462
  %496 = vst [vmem:[#allocation2 + $0x50] sm:$0xff] %v463
  %497 = vst.msk [vmem:[#allocation2 + $0x58] sm:$0xff] %vm486, %v464
  %498 = vst [vmem:[#allocation2 + $0x60] sm:$0xff] %v465
  %499 = vst.msk [vmem:[#allocation2 + $0x68] sm:$0xff] %vm486, %v466
  %500 = vst [vmem:[#allocation2 + $0x70] sm:$0xff] %v467
  %501 = vst.msk [vmem:[#allocation2 + $0x78] sm:$0xff] %vm486, %v468
  %502 = vst [vmem:[#allocation2 + $0x80] sm:$0xff] %v469
  %503 = vst.msk [vmem:[#allocation2 + $0x88] sm:$0xff] %vm486, %v470
  %504 = vst [vmem:[#allocation2 + $0x90] sm:$0xff] %v471
  %505 = vst.msk [vmem:[#allocation2 + $0x98] sm:$0xff] %vm486, %v472
  %506 = vst [vmem:[#allocation2 + $0xa0] sm:$0xff] %v473
  %507 = vst.msk [vmem:[#allocation2 + $0xa8] sm:$0xff] %vm486, %v474
  %508 = vst [vmem:[#allocation2 + $0xb0] sm:$0xff] %v475
  %509 = vst.msk [vmem:[#allocation2 + $0xb8] sm:$0xff] %vm486, %v476
  %510 = vst [vmem:[#allocation2 + $0xc0] sm:$0xff] %v477
  %511 = vst.msk [vmem:[#allocation2 + $0xc8] sm:$0xff] %vm486, %v478
  %512 = vst [vmem:[#allocation2 + $0xd0] sm:$0xff] %v479
  %513 = vst.msk [vmem:[#allocation2 + $0xd8] sm:$0xff] %vm486, %v480
  %514 = vst [vmem:[#allocation2 + $0xe0] sm:$0xff] %v481
  %515 = vst.msk [vmem:[#allocation2 + $0xe8] sm:$0xff] %vm486, %v482
  %516 = vst [vmem:[#allocation2 + $0xf0] sm:$0xff] %v483
  %517 = vst.msk [vmem:[#allocation2 + $0xf8] sm:$0xff] %vm486, %v484
  %v518 = vld [vmem:[%s4] sm:$0x1]
  loop: start=0, step=1, limit=4
  $region26: #{global_local_attention.1} parent=0 // loop_pre_header
    _
  $region27: #{global_local_attention.1} parent=0 // loop_header
    %s520 = sphi 0, %s524
    %p521 = scmp.ge.s32.totalorder %s520, 4
  $region28: #{global_local_attention.1} parent=0 // loop_header_branch
    %523 = sbr.rel (%p521) target = $region32
  $region29: #{global_local_attention.1} parent=0 // loop_body
    %s525 = smul.u32 %s520, 8
    %s526 = smul.addr %s525, 8
    %s527 = scalar_lea.vmem [#allocation2], %s526
    %v528 = vld [vmem:[%s527] sm:$0xff]
    %v529 = vld [vmem:[%s527 + $0x8] sm:$0xff]
    %v530 = vld [vmem:[%s527 + $0x10] sm:$0xff]
    %v531 = vld [vmem:[%s527 + $0x18] sm:$0xff]
    %v532 = vld [vmem:[%s527 + $0x20] sm:$0xff]
    %v533 = vld [vmem:[%s527 + $0x28] sm:$0xff]
    %v534 = vld [vmem:[%s527 + $0x30] sm:$0xff]
    %v535 = vld [vmem:[%s527 + $0x38] sm:$0xff]
    %v536 = vld [vmem:[%s5] sm:$0xff]
    %v537 = vld [vmem:[%s5 + $0x8] sm:$0xff]
    %v538 = vld [vmem:[%s5 + $0x10] sm:$0xff]
    %v539 = vld [vmem:[%s5 + $0x18] sm:$0xff]
    %v540 = vld [vmem:[%s5 + $0x20] sm:$0xff]
    %v541 = vld [vmem:[%s5 + $0x28] sm:$0xff]
    %v542 = vld [vmem:[%s5 + $0x30] sm:$0xff]
    %v543 = vld [vmem:[%s5 + $0x38] sm:$0xff]
    %548 = vrot.lane.b32.xlu0 %v528, 64
    %v549 = vpop.permute.xlu0 %548
    %550 = vrot.lane.b32.xlu0 %v530, 64
    %v551 = vpop.permute.xlu0 %550
    %552 = vrot.lane.b32.xlu0 %v532, 64
    %v553 = vpop.permute.xlu0 %552
    %554 = vrot.lane.b32.xlu0 %v534, 64
    %v555 = vpop.permute.xlu0 %554
    %vm556 = vcmask 130048
    %v558 = vsel %vm556, %v528, 0
    %v561 = vsel %vm556, %v530, 0
    %v564 = vsel %vm556, %v532, 0
    %v567 = vsel %vm556, %v534, 0
    %v570 = vsel %vm556, %v549, 0
    %v573 = vsel %vm556, %v551, 0
    %v576 = vsel %vm556, %v553, 0
    %v579 = vsel %vm556, %v555, 0
    %581 = vmatprep.subr.bf16.mxu0 0
    %582 = vmatpush1.bf16.xpose.msra.mxu0 %v570
    %583 = vmatprep.subr.bf16.mxu0 0
    %584 = vmatpush1.bf16.xpose.msra.mxu0 %v573
    %585 = vmatprep.subr.bf16.mxu0 0
    %586 = vmatpush1.bf16.xpose.msra.mxu0 %v576
    %587 = vmatprep.subr.bf16.mxu0 0
    %588 = vmatpush1.bf16.xpose.msra.mxu0 %v579
    %589 = vmatprep.subr.bf16.mxu0 0
    %590 = vmatpush1.bf16.xpose.msra.mxu0 0
    %591 = vmatprep.subr.bf16.mxu0 0
    %592 = vmatpush1.bf16.xpose.msra.mxu0 0
    %593 = vmatprep.subr.bf16.mxu0 0
    %594 = vmatpush1.bf16.xpose.msra.mxu0 0
    %595 = vmatprep.subr.bf16.mxu0 0
    %596 = vmatpush1.bf16.xpose.msra.mxu0 0
    %597 = vmatprep.subr.bf16.mxu0 0
    %598 = vmatpush1.bf16.xpose.msra.mxu0 0
    %599 = vmatprep.subr.bf16.mxu0 0
    %600 = vmatpush1.bf16.xpose.msra.mxu0 0
    %601 = vmatprep.subr.bf16.mxu0 0
    %602 = vmatpush1.bf16.xpose.msra.mxu0 0
    %603 = vmatprep.subr.bf16.mxu0 0
    %604 = vmatpush1.bf16.xpose.msra.mxu0 0
    %605 = vmatprep.subr.bf16.mxu0 0
    %606 = vmatpush1.bf16.xpose.msra.mxu0 0
    %607 = vmatprep.subr.bf16.mxu0 0
    %608 = vmatpush1.bf16.xpose.msra.mxu0 0
    %609 = vmatprep.subr.bf16.mxu0 0
    %610 = vmatpush1.bf16.xpose.msra.mxu0 0
    %611 = vmatprep.subr.bf16.mxu0 0
    %612 = vmatpush1.bf16.xpose.msra.mxu0 0
    %613 = vmatprep.mubr.bf16.mxu0 0
    %614 = vmatmul.mubr.bf16.gmra.mrb[0].mxu0 %v558
    %v615 = vpop.f32.mrb[0].mxu0
    %v616 = vadd.f32 %v536, %v615
    %v617 = vpop.f32.mrb[0].mxu0
    %v618 = vpop.f32.mrb[0].mxu0
    %v619 = vadd.f32 %v537, %v618
    %v620 = vpop.f32.mrb[0].mxu0
    %621 = vmatprep.mubr.bf16.mxu0 0
    %622 = vmatmul.mubr.bf16.gmra.mrb[0].mxu0 %v561
    %v623 = vpop.f32.mrb[0].mxu0
    %v624 = vadd.f32 %v538, %v623
    %v625 = vpop.f32.mrb[0].mxu0
    %v626 = vpop.f32.mrb[0].mxu0
    %v627 = vadd.f32 %v539, %v626
    %v628 = vpop.f32.mrb[0].mxu0
    %629 = vmatprep.mubr.bf16.mxu0 0
    %630 = vmatmul.mubr.bf16.gmra.mrb[0].mxu0 %v564
    %v631 = vpop.f32.mrb[0].mxu0
    %v632 = vadd.f32 %v540, %v631
    %v633 = vpop.f32.mrb[0].mxu0
    %v634 = vpop.f32.mrb[0].mxu0
    %v635 = vadd.f32 %v541, %v634
    %v636 = vpop.f32.mrb[0].mxu0
    %637 = vmatprep.mubr.bf16.mxu0 0
    %638 = vmatmul.mubr.bf16.gmra.mrb[0].mxu0 %v567
    %v639 = vpop.f32.mrb[0].mxu0
    %v640 = vadd.f32 %v542, %v639
    %v641 = vpop.f32.mrb[0].mxu0
    %v642 = vpop.f32.mrb[0].mxu0
    %v643 = vadd.f32 %v543, %v642
    %v644 = vpop.f32.mrb[0].mxu0
    %645 = vdwg.mxu0
    %v646 = vsel %vm486, %v616, -inf
    %647 = vmax.xlane.f32.xlu0 %v646
    %v648 = vpop.xlane.xlu0 %647
    %v649 = vsel %vm486, %v619, -inf
    %650 = vmax.xlane.f32.xlu0 %v649
    %v651 = vpop.xlane.xlu0 %650
    %v652 = vsel %vm486, %v624, -inf
    %653 = vmax.xlane.f32.xlu0 %v652
    %v654 = vpop.xlane.xlu0 %653
    %v655 = vsel %vm486, %v627, -inf
    %656 = vmax.xlane.f32.xlu0 %v655
    %v657 = vpop.xlane.xlu0 %656
    %v658 = vsel %vm486, %v632, -inf
    %659 = vmax.xlane.f32.xlu0 %v658
    %v660 = vpop.xlane.xlu0 %659
    %v661 = vsel %vm486, %v635, -inf
    %662 = vmax.xlane.f32.xlu0 %v661
    %v663 = vpop.xlane.xlu0 %662
    %v664 = vsel %vm486, %v640, -inf
    %665 = vmax.xlane.f32.xlu0 %v664
    %v666 = vpop.xlane.xlu0 %665
    %v667 = vsel %vm486, %v643, -inf
    %668 = vmax.xlane.f32.xlu0 %v667
    %v669 = vpop.xlane.xlu0 %668
    %v670 = vsub.f32 %v616, %v648
    %v671 = vsub.f32 %v619, %v651
    %v672 = vsub.f32 %v624, %v654
    %v673 = vsub.f32 %v627, %v657
    %v674 = vsub.f32 %v632, %v660
    %v675 = vsub.f32 %v635, %v663
    %v676 = vsub.f32 %v640, %v666
    %v677 = vsub.f32 %v643, %v669
    %v678 = vmul.f32 %v670, 1.442695
    %v679 = vpow.pop %v678
    %v680 = vmul.f32 %v671, 1.442695
    %v681 = vpow.pop %v680
    %v682 = vmul.f32 %v672, 1.442695
    %v683 = vpow.pop %v682
    %v684 = vmul.f32 %v673, 1.442695
    %v685 = vpow.pop %v684
    %v686 = vmul.f32 %v674, 1.442695
    %v687 = vpow.pop %v686
    %v688 = vmul.f32 %v675, 1.442695
    %v689 = vpow.pop %v688
    %v690 = vmul.f32 %v676, 1.442695
    %v691 = vpow.pop %v690
    %v692 = vmul.f32 %v677, 1.442695
    %v693 = vpow.pop %v692
    %v694 = vsel %vm486, %v679, 0.0
    %695 = vadd.xlane.f32.xlu0 %v694
    %v696 = vpop.xlane.xlu0 %695
    %v697 = vsel %vm486, %v681, 0.0
    %698 = vadd.xlane.f32.xlu0 %v697
    %v699 = vpop.xlane.xlu0 %698
    %v700 = vsel %vm486, %v683, 0.0
    %701 = vadd.xlane.f32.xlu0 %v700
    %v702 = vpop.xlane.xlu0 %701
    %v703 = vsel %vm486, %v685, 0.0
    %704 = vadd.xlane.f32.xlu0 %v703
    %v705 = vpop.xlane.xlu0 %704
    %v706 = vsel %vm486, %v687, 0.0
    %707 = vadd.xlane.f32.xlu0 %v706
    %v708 = vpop.xlane.xlu0 %707
    %v709 = vsel %vm486, %v689, 0.0
    %710 = vadd.xlane.f32.xlu0 %v709
    %v711 = vpop.xlane.xlu0 %710
    %v712 = vsel %vm486, %v691, 0.0
    %713 = vadd.xlane.f32.xlu0 %v712
    %v714 = vpop.xlane.xlu0 %713
    %v715 = vsel %vm486, %v693, 0.0
    %716 = vadd.xlane.f32.xlu0 %v715
    %v717 = vpop.xlane.xlu0 %716
    %v718 = vrcp.pop %v696
    %v719 = vrcp.pop %v699
    %v720 = vrcp.pop %v702
    %v721 = vrcp.pop %v705
    %v722 = vrcp.pop %v708
    %v723 = vrcp.pop %v711
    %v724 = vrcp.pop %v714
    %v725 = vrcp.pop %v717
    %v726 = vmul.f32 %v679, %v718
    %v727 = vmul.f32 %v681, %v719
    %v728 = vmul.f32 %v683, %v720
    %v729 = vmul.f32 %v685, %v721
    %v730 = vmul.f32 %v687, %v722
    %v731 = vmul.f32 %v689, %v723
    %v732 = vmul.f32 %v691, %v724
    %v733 = vmul.f32 %v693, %v725
    %v734 = vpack.c.bf16 %v727, %v726
    %v735 = vpack.c.bf16 %v729, %v728
    %v736 = vpack.c.bf16 %v731, %v730
    %v737 = vpack.c.bf16 %v733, %v732
    %v739 = vsel %vm486, %v734, 0
    %v742 = vsel %vm486, %v735, 0
    %v745 = vsel %vm486, %v736, 0
    %v748 = vsel %vm486, %v737, 0
    %750 = vmatprep.subr.bf16.mxu0 0
    %751 = vmatpush1.bf16.msra.mxu0 %v529
    %752 = vmatprep.subr.bf16.mxu0 0
    %753 = vmatpush1.bf16.msra.mxu0 %v531
    %754 = vmatprep.subr.bf16.mxu0 0
    %755 = vmatpush1.bf16.msra.mxu0 %v533
    %756 = vmatprep.subr.bf16.mxu0 0
    %757 = vmatpush1.bf16.msra.mxu0 %v535
    %758 = vmatprep.subr.bf16.mxu0 0
    %759 = vmatpush1.bf16.msra.mxu0 0
    %760 = vmatprep.subr.bf16.mxu0 0
    %761 = vmatpush1.bf16.msra.mxu0 0
    %762 = vmatprep.subr.bf16.mxu0 0
    %763 = vmatpush1.bf16.msra.mxu0 0
    %764 = vmatprep.subr.bf16.mxu0 0
    %765 = vmatpush1.bf16.msra.mxu0 0
    %766 = vmatprep.subr.bf16.mxu0 0
    %767 = vmatpush1.bf16.msra.mxu0 0
    %768 = vmatprep.subr.bf16.mxu0 0
    %769 = vmatpush1.bf16.msra.mxu0 0
    %770 = vmatprep.subr.bf16.mxu0 0
    %771 = vmatpush1.bf16.msra.mxu0 0
    %772 = vmatprep.subr.bf16.mxu0 0
    %773 = vmatpush1.bf16.msra.mxu0 0
    %774 = vmatprep.subr.bf16.mxu0 0
    %775 = vmatpush1.bf16.msra.mxu0 0
    %776 = vmatprep.subr.bf16.mxu0 0
    %777 = vmatpush1.bf16.msra.mxu0 0
    %778 = vmatprep.subr.bf16.mxu0 0
    %779 = vmatpush1.bf16.msra.mxu0 0
    %780 = vmatprep.subr.bf16.mxu0 0
    %781 = vmatpush1.bf16.msra.mxu0 0
    %782 = vmatprep.mubr.bf16.mxu0 0
    %783 = vmatmul.mubr.bf16.gmra.mrb[0].mxu0 %v739
    %v784 = vpop.f32.mrb[0].mxu0
    %v785 = vadd.f32 0.0, %v784
    %v786 = vpop.f32.mrb[0].mxu0
    %v787 = vpop.f32.mrb[0].mxu0
    %v788 = vadd.f32 0.0, %v787
    %v789 = vpop.f32.mrb[0].mxu0
    %790 = vmatprep.mubr.bf16.mxu0 0
    %791 = vmatmul.mubr.bf16.gmra.mrb[0].mxu0 %v742
    %v792 = vpop.f32.mrb[0].mxu0
    %v793 = vadd.f32 0.0, %v792
    %v794 = vpop.f32.mrb[0].mxu0
    %v795 = vpop.f32.mrb[0].mxu0
    %v796 = vadd.f32 0.0, %v795
    %v797 = vpop.f32.mrb[0].mxu0
    %798 = vmatprep.mubr.bf16.mxu0 0
    %799 = vmatmul.mubr.bf16.gmra.mrb[0].mxu0 %v745
    %v800 = vpop.f32.mrb[0].mxu0
    %v801 = vadd.f32 0.0, %v800
    %v802 = vpop.f32.mrb[0].mxu0
    %v803 = vpop.f32.mrb[0].mxu0
    %v804 = vadd.f32 0.0, %v803
    %v805 = vpop.f32.mrb[0].mxu0
    %806 = vmatprep.mubr.bf16.mxu0 0
    %807 = vmatmul.mubr.bf16.gmra.mrb[0].mxu0 %v748
    %v808 = vpop.f32.mrb[0].mxu0
    %v809 = vadd.f32 0.0, %v808
    %v810 = vpop.f32.mrb[0].mxu0
    %v811 = vpop.f32.mrb[0].mxu0
    %v812 = vadd.f32 0.0, %v811
    %v813 = vpop.f32.mrb[0].mxu0
    %814 = vdwg.mxu0
    %v815 = vpack.c.bf16 %v788, %v785
    %v816 = vpack.c.bf16 %v796, %v793
    %v817 = vpack.c.bf16 %v804, %v801
    %v818 = vpack.c.bf16 %v812, %v809
    %819 = vst.msk [vmem:[#allocation3] sm:$0xff] %vm556, %v815
    %820 = vst.msk [vmem:[#allocation3 + $0x8] sm:$0xff] %vm556, %v816
    %821 = vst.msk [vmem:[#allocation3 + $0x10] sm:$0xff] %vm556, %v817
    %822 = vst.msk [vmem:[#allocation3 + $0x18] sm:$0xff] %vm556, %v818
    %s823 = scalar_lea.vmem %s5, 64
    %v824 = vld [vmem:[%s823] sm:$0xff]
    %v825 = vld [vmem:[%s823 + $0x8] sm:$0xff]
    %v826 = vld [vmem:[%s823 + $0x10] sm:$0xff]
    %v827 = vld [vmem:[%s823 + $0x18] sm:$0xff]
    %v828 = vld [vmem:[%s823 + $0x20] sm:$0xff]
    %v829 = vld [vmem:[%s823 + $0x28] sm:$0xff]
    %v830 = vld [vmem:[%s823 + $0x30] sm:$0xff]
    %v831 = vld [vmem:[%s823 + $0x38] sm:$0xff]
    %832 = vrot.lane.b32.xlu0 %v528, 112
    %v833 = vpop.permute.xlu0 %832
    %834 = vrot.lane.b32.xlu0 %v530, 112
    %v835 = vpop.permute.xlu0 %834
    %836 = vrot.lane.b32.xlu0 %v532, 112
    %v837 = vpop.permute.xlu0 %836
    %838 = vrot.lane.b32.xlu0 %v534, 112
    %v839 = vpop.permute.xlu0 %838
    %840 = vrot.lane.b32.xlu0 %v528, 48
    %v841 = vpop.permute.xlu0 %840
    %842 = vrot.lane.b32.xlu0 %v530, 48
    %v843 = vpop.permute.xlu0 %842
    %844 = vrot.lane.b32.xlu0 %v532, 48
    %v845 = vpop.permute.xlu0 %844
    %846 = vrot.lane.b32.xlu0 %v534, 48
    %v847 = vpop.permute.xlu0 %846
    %v849 = vsel %vm556, %v833, 0
    %v852 = vsel %vm556, %v835, 0
    %v855 = vsel %vm556, %v837, 0
    %v858 = vsel %vm556, %v839, 0
    %v861 = vsel %vm556, %v841, 0
    %v864 = vsel %vm556, %v843, 0
    %v867 = vsel %vm556, %v845, 0
    %v870 = vsel %vm556, %v847, 0
    %872 = vmatprep.subr.bf16.mxu0 0
    %873 = vmatpush1.bf16.xpose.msra.mxu0 %v861
    %874 = vmatprep.subr.bf16.mxu0 0
    %875 = vmatpush1.bf16.xpose.msra.mxu0 %v864
    %876 = vmatprep.subr.bf16.mxu0 0
    %877 = vmatpush1.bf16.xpose.msra.mxu0 %v867
    %878 = vmatprep.subr.bf16.mxu0 0
    %879 = vmatpush1.bf16.xpose.msra.mxu0 %v870
    %880 = vmatprep.subr.bf16.mxu0 0
    %881 = vmatpush1.bf16.xpose.msra.mxu0 0
    %882 = vmatprep.subr.bf16.mxu0 0
    %883 = vmatpush1.bf16.xpose.msra.mxu0 0
    %884 = vmatprep.subr.bf16.mxu0 0
    %885 = vmatpush1.bf16.xpose.msra.mxu0 0
    %886 = vmatprep.subr.bf16.mxu0 0
    %887 = vmatpush1.bf16.xpose.msra.mxu0 0
    %888 = vmatprep.subr.bf16.mxu0 0
    %889 = vmatpush1.bf16.xpose.msra.mxu0 0
    %890 = vmatprep.subr.bf16.mxu0 0
    %891 = vmatpush1.bf16.xpose.msra.mxu0 0
    %892 = vmatprep.subr.bf16.mxu0 0
    %893 = vmatpush1.bf16.xpose.msra.mxu0 0
    %894 = vmatprep.subr.bf16.mxu0 0
    %895 = vmatpush1.bf16.xpose.msra.mxu0 0
    %896 = vmatprep.subr.bf16.mxu0 0
    %897 = vmatpush1.bf16.xpose.msra.mxu0 0
    %898 = vmatprep.subr.bf16.mxu0 0
    %899 = vmatpush1.bf16.xpose.msra.mxu0 0
    %900 = vmatprep.subr.bf16.mxu0 0
    %901 = vmatpush1.bf16.xpose.msra.mxu0 0
    %902 = vmatprep.subr.bf16.mxu0 0
    %903 = vmatpush1.bf16.xpose.msra.mxu0 0
    %904 = vmatprep.mubr.bf16.mxu0 0
    %905 = vmatmul.mubr.bf16.gmra.mrb[0].mxu0 %v849
    %v906 = vpop.f32.mrb[0].mxu0
    %v907 = vadd.f32 %v824, %v906
    %v908 = vpop.f32.mrb[0].mxu0
    %v909 = vpop.f32.mrb[0].mxu0
    %v910 = vadd.f32 %v825, %v909
    %v911 = vpop.f32.mrb[0].mxu0
    %912 = vmatprep.mubr.bf16.mxu0 0
    %913 = vmatmul.mubr.bf16.gmra.mrb[0].mxu0 %v852
    %v914 = vpop.f32.mrb[0].mxu0
    %v915 = vadd.f32 %v826, %v914
    %v916 = vpop.f32.mrb[0].mxu0
    %v917 = vpop.f32.mrb[0].mxu0
    %v918 = vadd.f32 %v827, %v917
    %v919 = vpop.f32.mrb[0].mxu0
    %920 = vmatprep.mubr.bf16.mxu0 0
    %921 = vmatmul.mubr.bf16.gmra.mrb[0].mxu0 %v855
    %v922 = vpop.f32.mrb[0].mxu0
    %v923 = vadd.f32 %v828, %v922
    %v924 = vpop.f32.mrb[0].mxu0
    %v925 = vpop.f32.mrb[0].mxu0
    %v926 = vadd.f32 %v829, %v925
    %v927 = vpop.f32.mrb[0].mxu0
    %928 = vmatprep.mubr.bf16.mxu0 0
    %929 = vmatmul.mubr.bf16.gmra.mrb[0].mxu0 %v858
    %v930 = vpop.f32.mrb[0].mxu0
    %v931 = vadd.f32 %v830, %v930
    %v932 = vpop.f32.mrb[0].mxu0
    %v933 = vpop.f32.mrb[0].mxu0
    %v934 = vadd.f32 %v831, %v933
    %v935 = vpop.f32.mrb[0].mxu0
    %936 = vdwg.mxu0
    %v937 = vsel %vm486, %v907, -inf
    %938 = vmax.xlane.f32.xlu0 %v937
    %v939 = vpop.xlane.xlu0 %938
    %v940 = vsel %vm486, %v910, -inf
    %941 = vmax.xlane.f32.xlu0 %v940
    %v942 = vpop.xlane.xlu0 %941
    %v943 = vsel %vm486, %v915, -inf
    %944 = vmax.xlane.f32.xlu0 %v943
    %v945 = vpop.xlane.xlu0 %944
    %v946 = vsel %vm486, %v918, -inf
    %947 = vmax.xlane.f32.xlu0 %v946
    %v948 = vpop.xlane.xlu0 %947
    %v949 = vsel %vm486, %v923, -inf
    %950 = vmax.xlane.f32.xlu0 %v949
    %v951 = vpop.xlane.xlu0 %950
    %v952 = vsel %vm486, %v926, -inf
    %953 = vmax.xlane.f32.xlu0 %v952
    %v954 = vpop.xlane.xlu0 %953
    %v955 = vsel %vm486, %v931, -inf
    %956 = vmax.xlane.f32.xlu0 %v955
    %v957 = vpop.xlane.xlu0 %956
    %v958 = vsel %vm486, %v934, -inf
    %959 = vmax.xlane.f32.xlu0 %v958
    %v960 = vpop.xlane.xlu0 %959
    %v961 = vsub.f32 %v907, %v939
    %v962 = vsub.f32 %v910, %v942
    %v963 = vsub.f32 %v915, %v945
    %v964 = vsub.f32 %v918, %v948
    %v965 = vsub.f32 %v923, %v951
    %v966 = vsub.f32 %v926, %v954
    %v967 = vsub.f32 %v931, %v957
    %v968 = vsub.f32 %v934, %v960
    %v969 = vmul.f32 %v961, 1.442695
    %v970 = vpow.pop %v969
    %v971 = vmul.f32 %v962, 1.442695
    %v972 = vpow.pop %v971
    %v973 = vmul.f32 %v963, 1.442695
    %v974 = vpow.pop %v973
    %v975 = vmul.f32 %v964, 1.442695
    %v976 = vpow.pop %v975
    %v977 = vmul.f32 %v965, 1.442695
    %v978 = vpow.pop %v977
    %v979 = vmul.f32 %v966, 1.442695
    %v980 = vpow.pop %v979
    %v981 = vmul.f32 %v967, 1.442695
    %v982 = vpow.pop %v981
    %v983 = vmul.f32 %v968, 1.442695
    %v984 = vpow.pop %v983
    %v985 = vsel %vm486, %v970, 0.0
    %986 = vadd.xlane.f32.xlu0 %v985
    %v987 = vpop.xlane.xlu0 %986
    %v988 = vsel %vm486, %v972, 0.0
    %989 = vadd.xlane.f32.xlu0 %v988
    %v990 = vpop.xlane.xlu0 %989
    %v991 = vsel %vm486, %v974, 0.0
    %992 = vadd.xlane.f32.xlu0 %v991
    %v993 = vpop.xlane.xlu0 %992
    %v994 = vsel %vm486, %v976, 0.0
    %995 = vadd.xlane.f32.xlu0 %v994
    %v996 = vpop.xlane.xlu0 %995
    %v997 = vsel %vm486, %v978, 0.0
    %998 = vadd.xlane.f32.xlu0 %v997
    %v999 = vpop.xlane.xlu0 %998
    %v1000 = vsel %vm486, %v980, 0.0
    %1001 = vadd.xlane.f32.xlu0 %v1000
    %v1002 = vpop.xlane.xlu0 %1001
    %v1003 = vsel %vm486, %v982, 0.0
    %1004 = vadd.xlane.f32.xlu0 %v1003
    %v1005 = vpop.xlane.xlu0 %1004
    %v1006 = vsel %vm486, %v984, 0.0
    %1007 = vadd.xlane.f32.xlu0 %v1006
    %v1008 = vpop.xlane.xlu0 %1007
    %v1009 = vrcp.pop %v987
    %v1010 = vrcp.pop %v990
    %v1011 = vrcp.pop %v993
    %v1012 = vrcp.pop %v996
    %v1013 = vrcp.pop %v999
    %v1014 = vrcp.pop %v1002
    %v1015 = vrcp.pop %v1005
    %v1016 = vrcp.pop %v1008
    %v1017 = vmul.f32 %v970, %v1009
    %v1018 = vmul.f32 %v972, %v1010
    %v1019 = vmul.f32 %v974, %v1011
    %v1020 = vmul.f32 %v976, %v1012
    %v1021 = vmul.f32 %v978, %v1013
    %v1022 = vmul.f32 %v980, %v1014
    %v1023 = vmul.f32 %v982, %v1015
    %v1024 = vmul.f32 %v984, %v1016
    %v1025 = vpack.c.bf16 %v1018, %v1017
    %v1026 = vpack.c.bf16 %v1020, %v1019
    %v1027 = vpack.c.bf16 %v1022, %v1021
    %v1028 = vpack.c.bf16 %v1024, %v1023
    %1033 = vrot.lane.b32.xlu0 %v529, 112
    %v1034 = vpop.permute.xlu0 %1033
    %1035 = vrot.lane.b32.xlu0 %v531, 112
    %v1036 = vpop.permute.xlu0 %1035
    %1037 = vrot.lane.b32.xlu0 %v533, 112
    %v1038 = vpop.permute.xlu0 %1037
    %1039 = vrot.lane.b32.xlu0 %v535, 112
    %v1040 = vpop.permute.xlu0 %1039
    %v1046 = vsel %vm486, %v1025, 0
    %v1049 = vsel %vm486, %v1026, 0
    %v1052 = vsel %vm486, %v1027, 0
    %v1055 = vsel %vm486, %v1028, 0
    %1057 = vmatprep.subr.bf16.mxu0 0
    %1058 = vmatpush1.bf16.msra.mxu0 %v1034
    %1059 = vmatprep.subr.bf16.mxu0 0
    %1060 = vmatpush1.bf16.msra.mxu0 %v1036
    %1061 = vmatprep.subr.bf16.mxu0 0
    %1062 = vmatpush1.bf16.msra.mxu0 %v1038
    %1063 = vmatprep.subr.bf16.mxu0 0
    %1064 = vmatpush1.bf16.msra.mxu0 %v1040
    %1065 = vmatprep.subr.bf16.mxu0 0
    %1066 = vmatpush1.bf16.msra.mxu0 0
    %1067 = vmatprep.subr.bf16.mxu0 0
    %1068 = vmatpush1.bf16.msra.mxu0 0
    %1069 = vmatprep.subr.bf16.mxu0 0
    %1070 = vmatpush1.bf16.msra.mxu0 0
    %1071 = vmatprep.subr.bf16.mxu0 0
    %1072 = vmatpush1.bf16.msra.mxu0 0
    %1073 = vmatprep.subr.bf16.mxu0 0
    %1074 = vmatpush1.bf16.msra.mxu0 0
    %1075 = vmatprep.subr.bf16.mxu0 0
    %1076 = vmatpush1.bf16.msra.mxu0 0
    %1077 = vmatprep.subr.bf16.mxu0 0
    %1078 = vmatpush1.bf16.msra.mxu0 0
    %1079 = vmatprep.subr.bf16.mxu0 0
    %1080 = vmatpush1.bf16.msra.mxu0 0
    %1081 = vmatprep.subr.bf16.mxu0 0
    %1082 = vmatpush1.bf16.msra.mxu0 0
    %1083 = vmatprep.subr.bf16.mxu0 0
    %1084 = vmatpush1.bf16.msra.mxu0 0
    %1085 = vmatprep.subr.bf16.mxu0 0
    %1086 = vmatpush1.bf16.msra.mxu0 0
    %1087 = vmatprep.subr.bf16.mxu0 0
    %1088 = vmatpush1.bf16.msra.mxu0 0
    %1089 = vmatprep.mubr.bf16.mxu0 0
    %1090 = vmatmul.mubr.bf16.gmra.mrb[0].mxu0 %v1046
    %v1091 = vpop.f32.mrb[0].mxu0
    %v1092 = vadd.f32 0.0, %v1091
    %v1093 = vpop.f32.mrb[0].mxu0
    %v1094 = vpop.f32.mrb[0].mxu0
    %v1095 = vadd.f32 0.0, %v1094
    %v1096 = vpop.f32.mrb[0].mxu0
    %1097 = vmatprep.mubr.bf16.mxu0 0
    %1098 = vmatmul.mubr.bf16.gmra.mrb[0].mxu0 %v1049
    %v1099 = vpop.f32.mrb[0].mxu0
    %v1100 = vadd.f32 0.0, %v1099
    %v1101 = vpop.f32.mrb[0].mxu0
    %v1102 = vpop.f32.mrb[0].mxu0
    %v1103 = vadd.f32 0.0, %v1102
    %v1104 = vpop.f32.mrb[0].mxu0
    %1105 = vmatprep.mubr.bf16.mxu0 0
    %1106 = vmatmul.mubr.bf16.gmra.mrb[0].mxu0 %v1052
    %v1107 = vpop.f32.mrb[0].mxu0
    %v1108 = vadd.f32 0.0, %v1107
    %v1109 = vpop.f32.mrb[0].mxu0
    %v1110 = vpop.f32.mrb[0].mxu0
    %v1111 = vadd.f32 0.0, %v1110
    %v1112 = vpop.f32.mrb[0].mxu0
    %1113 = vmatprep.mubr.bf16.mxu0 0
    %1114 = vmatmul.mubr.bf16.gmra.mrb[0].mxu0 %v1055
    %v1115 = vpop.f32.mrb[0].mxu0
    %v1116 = vadd.f32 0.0, %v1115
    %v1117 = vpop.f32.mrb[0].mxu0
    %v1118 = vpop.f32.mrb[0].mxu0
    %v1119 = vadd.f32 0.0, %v1118
    %v1120 = vpop.f32.mrb[0].mxu0
    %1121 = vdwg.mxu0
    %v1122 = vpack.c.bf16 %v1095, %v1092
    %v1123 = vpack.c.bf16 %v1103, %v1100
    %v1124 = vpack.c.bf16 %v1111, %v1108
    %v1125 = vpack.c.bf16 %v1119, %v1116
    %1130 = vrot.lane.b32.xlu0 %v1122, 16
    %v1131 = vpop.permute.xlu0 %1130
    %1132 = vrot.lane.b32.xlu0 %v1123, 16
    %v1133 = vpop.permute.xlu0 %1132
    %1134 = vrot.lane.b32.xlu0 %v1124, 16
    %v1135 = vpop.permute.xlu0 %1134
    %1136 = vrot.lane.b32.xlu0 %v1125, 16
    %v1137 = vpop.permute.xlu0 %1136
    %vm1142 = vcmask 261248
    %1143 = vst.msk [vmem:[#allocation3] sm:$0xff] %vm1142, %v1131
    %1144 = vst.msk [vmem:[#allocation3 + $0x8] sm:$0xff] %vm1142, %v1133
    %1145 = vst.msk [vmem:[#allocation3 + $0x10] sm:$0xff] %vm1142, %v1135
    %1146 = vst.msk [vmem:[#allocation3 + $0x18] sm:$0xff] %vm1142, %v1137
    %s1147 = scalar_lea.vmem %s5, 128
    %v1148 = vld [vmem:[%s1147] sm:$0xff]
    %v1149 = vld [vmem:[%s1147 + $0x8] sm:$0xff]
    %v1150 = vld [vmem:[%s1147 + $0x10] sm:$0xff]
    %v1151 = vld [vmem:[%s1147 + $0x18] sm:$0xff]
    %v1152 = vld [vmem:[%s1147 + $0x20] sm:$0xff]
    %v1153 = vld [vmem:[%s1147 + $0x28] sm:$0xff]
    %v1154 = vld [vmem:[%s1147 + $0x30] sm:$0xff]
    %v1155 = vld [vmem:[%s1147 + $0x38] sm:$0xff]
    %1156 = vrot.lane.b32.xlu0 %v528, 96
    %v1157 = vpop.permute.xlu0 %1156
    %1158 = vrot.lane.b32.xlu0 %v530, 96
    %v1159 = vpop.permute.xlu0 %1158
    %1160 = vrot.lane.b32.xlu0 %v532, 96
    %v1161 = vpop.permute.xlu0 %1160
    %1162 = vrot.lane.b32.xlu0 %v534, 96
    %v1163 = vpop.permute.xlu0 %1162
    %1164 = vrot.lane.b32.xlu0 %v528, 32
    %v1165 = vpop.permute.xlu0 %1164
    %1166 = vrot.lane.b32.xlu0 %v530, 32
    %v1167 = vpop.permute.xlu0 %1166
    %1168 = vrot.lane.b32.xlu0 %v532, 32
    %v1169 = vpop.permute.xlu0 %1168
    %1170 = vrot.lane.b32.xlu0 %v534, 32
    %v1171 = vpop.permute.xlu0 %1170
    %v1173 = vsel %vm556, %v1157, 0
    %v1176 = vsel %vm556, %v1159, 0
    %v1179 = vsel %vm556, %v1161, 0
    %v1182 = vsel %vm556, %v1163, 0
    %v1185 = vsel %vm556, %v1165, 0
    %v1188 = vsel %vm556, %v1167, 0
    %v1191 = vsel %vm556, %v1169, 0
    %v1194 = vsel %vm556, %v1171, 0
    %1196 = vmatprep.subr.bf16.mxu0 0
    %1197 = vmatpush1.bf16.xpose.msra.mxu0 %v1185
    %1198 = vmatprep.subr.bf16.mxu0 0
    %1199 = vmatpush1.bf16.xpose.msra.mxu0 %v1188
    %1200 = vmatprep.subr.bf16.mxu0 0
    %1201 = vmatpush1.bf16.xpose.msra.mxu0 %v1191
    %1202 = vmatprep.subr.bf16.mxu0 0
    %1203 = vmatpush1.bf16.xpose.msra.mxu0 %v1194
    %1204 = vmatprep.subr.bf16.mxu0 0
    %1205 = vmatpush1.bf16.xpose.msra.mxu0 0
    %1206 = vmatprep.subr.bf16.mxu0 0
    %1207 = vmatpush1.bf16.xpose.msra.mxu0 0
    %1208 = vmatprep.subr.bf16.mxu0 0
    %1209 = vmatpush1.bf16.xpose.msra.mxu0 0
    %1210 = vmatprep.subr.bf16.mxu0 0
    %1211 = vmatpush1.bf16.xpose.msra.mxu0 0
    %1212 = vmatprep.subr.bf16.mxu0 0
    %1213 = vmatpush1.bf16.xpose.msra.mxu0 0
    %1214 = vmatprep.subr.bf16.mxu0 0
    %1215 = vmatpush1.bf16.xpose.msra.mxu0 0
    %1216 = vmatprep.subr.bf16.mxu0 0
    %1217 = vmatpush1.bf16.xpose.msra.mxu0 0
    %1218 = vmatprep.subr.bf16.mxu0 0
    %1219 = vmatpush1.bf16.xpose.msra.mxu0 0
    %1220 = vmatprep.subr.bf16.mxu0 0
    %1221 = vmatpush1.bf16.xpose.msra.mxu0 0
    %1222 = vmatprep.subr.bf16.mxu0 0
    %1223 = vmatpush1.bf16.xpose.msra.mxu0 0
    %1224 = vmatprep.subr.bf16.mxu0 0
    %1225 = vmatpush1.bf16.xpose.msra.mxu0 0
    %1226 = vmatprep.subr.bf16.mxu0 0
    %1227 = vmatpush1.bf16.xpose.msra.mxu0 0
    %1228 = vmatprep.mubr.bf16.mxu0 0
    %1229 = vmatmul.mubr.bf16.gmra.mrb[0].mxu0 %v1173
    %v1230 = vpop.f32.mrb[0].mxu0
    %v1231 = vadd.f32 %v1148, %v1230
    %v1232 = vpop.f32.mrb[0].mxu0
    %v1233 = vpop.f32.mrb[0].mxu0
    %v1234 = vadd.f32 %v1149, %v1233
    %v1235 = vpop.f32.mrb[0].mxu0
    %1236 = vmatprep.mubr.bf16.mxu0 0
    %1237 = vmatmul.mubr.bf16.gmra.mrb[0].mxu0 %v1176
    %v1238 = vpop.f32.mrb[0].mxu0
    %v1239 = vadd.f32 %v1150, %v1238
    %v1240 = vpop.f32.mrb[0].mxu0
    %v1241 = vpop.f32.mrb[0].mxu0
    %v1242 = vadd.f32 %v1151, %v1241
    %v1243 = vpop.f32.mrb[0].mxu0
    %1244 = vmatprep.mubr.bf16.mxu0 0
    %1245 = vmatmul.mubr.bf16.gmra.mrb[0].mxu0 %v1179
    %v1246 = vpop.f32.mrb[0].mxu0
    %v1247 = vadd.f32 %v1152, %v1246
    %v1248 = vpop.f32.mrb[0].mxu0
    %v1249 = vpop.f32.mrb[0].mxu0
    %v1250 = vadd.f32 %v1153, %v1249
    %v1251 = vpop.f32.mrb[0].mxu0
    %1252 = vmatprep.mubr.bf16.mxu0 0
    %1253 = vmatmul.mubr.bf16.gmra.mrb[0].mxu0 %v1182
    %v1254 = vpop.f32.mrb[0].mxu0
    %v1255 = vadd.f32 %v1154, %v1254
    %v1256 = vpop.f32.mrb[0].mxu0
    %v1257 = vpop.f32.mrb[0].mxu0
    %v1258 = vadd.f32 %v1155, %v1257
    %v1259 = vpop.f32.mrb[0].mxu0
    %1260 = vdwg.mxu0
    %v1261 = vsel %vm486, %v1231, -inf
    %1262 = vmax.xlane.f32.xlu0 %v1261
    %v1263 = vpop.xlane.xlu0 %1262
    %v1264 = vsel %vm486, %v1234, -inf
    %1265 = vmax.xlane.f32.xlu0 %v1264
    %v1266 = vpop.xlane.xlu0 %1265
    %v1267 = vsel %vm486, %v1239, -inf
    %1268 = vmax.xlane.f32.xlu0 %v1267
    %v1269 = vpop.xlane.xlu0 %1268
    %v1270 = vsel %vm486, %v1242, -inf
    %1271 = vmax.xlane.f32.xlu0 %v1270
    %v1272 = vpop.xlane.xlu0 %1271
    %v1273 = vsel %vm486, %v1247, -inf
    %1274 = vmax.xlane.f32.xlu0 %v1273
    %v1275 = vpop.xlane.xlu0 %1274
    %v1276 = vsel %vm486, %v1250, -inf
    %1277 = vmax.xlane.f32.xlu0 %v1276
    %v1278 = vpop.xlane.xlu0 %1277
    %v1279 = vsel %vm486, %v1255, -inf
    %1280 = vmax.xlane.f32.xlu0 %v1279
    %v1281 = vpop.xlane.xlu0 %1280
    %v1282 = vsel %vm486, %v1258, -inf
    %1283 = vmax.xlane.f32.xlu0 %v1282
    %v1284 = vpop.xlane.xlu0 %1283
    %v1285 = vsub.f32 %v1231, %v1263
    %v1286 = vsub.f32 %v1234, %v1266
    %v1287 = vsub.f32 %v1239, %v1269
    %v1288 = vsub.f32 %v1242, %v1272
    %v1289 = vsub.f32 %v1247, %v1275
    %v1290 = vsub.f32 %v1250, %v1278
    %v1291 = vsub.f32 %v1255, %v1281
    %v1292 = vsub.f32 %v1258, %v1284
    %v1293 = vmul.f32 %v1285, 1.442695
    %v1294 = vpow.pop %v1293
    %v1295 = vmul.f32 %v1286, 1.442695
    %v1296 = vpow.pop %v1295
    %v1297 = vmul.f32 %v1287, 1.442695
    %v1298 = vpow.pop %v1297
    %v1299 = vmul.f32 %v1288, 1.442695
    %v1300 = vpow.pop %v1299
    %v1301 = vmul.f32 %v1289, 1.442695
    %v1302 = vpow.pop %v1301
    %v1303 = vmul.f32 %v1290, 1.442695
    %v1304 = vpow.pop %v1303
    %v1305 = vmul.f32 %v1291, 1.442695
    %v1306 = vpow.pop %v1305
    %v1307 = vmul.f32 %v1292, 1.442695
    %v1308 = vpow.pop %v1307
    %v1309 = vsel %vm486, %v1294, 0.0
    %1310 = vadd.xlane.f32.xlu0 %v1309
    %v1311 = vpop.xlane.xlu0 %1310
    %v1312 = vsel %vm486, %v1296, 0.0
    %1313 = vadd.xlane.f32.xlu0 %v1312
    %v1314 = vpop.xlane.xlu0 %1313
    %v1315 = vsel %vm486, %v1298, 0.0
    %1316 = vadd.xlane.f32.xlu0 %v1315
    %v1317 = vpop.xlane.xlu0 %1316
    %v1318 = vsel %vm486, %v1300, 0.0
    %1319 = vadd.xlane.f32.xlu0 %v1318
    %v1320 = vpop.xlane.xlu0 %1319
    %v1321 = vsel %vm486, %v1302, 0.0
    %1322 = vadd.xlane.f32.xlu0 %v1321
    %v1323 = vpop.xlane.xlu0 %1322
    %v1324 = vsel %vm486, %v1304, 0.0
    %1325 = vadd.xlane.f32.xlu0 %v1324
    %v1326 = vpop.xlane.xlu0 %1325
    %v1327 = vsel %vm486, %v1306, 0.0
    %1328 = vadd.xlane.f32.xlu0 %v1327
    %v1329 = vpop.xlane.xlu0 %1328
    %v1330 = vsel %vm486, %v1308, 0.0
    %1331 = vadd.xlane.f32.xlu0 %v1330
    %v1332 = vpop.xlane.xlu0 %1331
    %v1333 = vrcp.pop %v1311
    %v1334 = vrcp.pop %v1314
    %v1335 = vrcp.pop %v1317
    %v1336 = vrcp.pop %v1320
    %v1337 = vrcp.pop %v1323
    %v1338 = vrcp.pop %v1326
    %v1339 = vrcp.pop %v1329
    %v1340 = vrcp.pop %v1332
    %v1341 = vmul.f32 %v1294, %v1333
    %v1342 = vmul.f32 %v1296, %v1334
    %v1343 = vmul.f32 %v1298, %v1335
    %v1344 = vmul.f32 %v1300, %v1336
    %v1345 = vmul.f32 %v1302, %v1337
    %v1346 = vmul.f32 %v1304, %v1338
    %v1347 = vmul.f32 %v1306, %v1339
    %v1348 = vmul.f32 %v1308, %v1340
    %v1349 = vpack.c.bf16 %v1342, %v1341
    %v1350 = vpack.c.bf16 %v1344, %v1343
    %v1351 = vpack.c.bf16 %v1346, %v1345
    %v1352 = vpack.c.bf16 %v1348, %v1347
    %1353 = vrot.lane.b32.xlu0 %v529, 96
    %v1354 = vpop.permute.xlu0 %1353
    %1355 = vrot.lane.b32.xlu0 %v531, 96
    %v1356 = vpop.permute.xlu0 %1355
    %1357 = vrot.lane.b32.xlu0 %v533, 96
    %v1358 = vpop.permute.xlu0 %1357
    %1359 = vrot.lane.b32.xlu0 %v535, 96
    %v1360 = vpop.permute.xlu0 %1359
    %v1366 = vsel %vm486, %v1349, 0
    %v1369 = vsel %vm486, %v1350, 0
    %v1372 = vsel %vm486, %v1351, 0
    %v1375 = vsel %vm486, %v1352, 0
    %1377 = vmatprep.subr.bf16.mxu0 0
    %1378 = vmatpush1.bf16.msra.mxu0 %v1354
    %1379 = vmatprep.subr.bf16.mxu0 0
    %1380 = vmatpush1.bf16.msra.mxu0 %v1356
    %1381 = vmatprep.subr.bf16.mxu0 0
    %1382 = vmatpush1.bf16.msra.mxu0 %v1358
    %1383 = vmatprep.subr.bf16.mxu0 0
    %1384 = vmatpush1.bf16.msra.mxu0 %v1360
    %1385 = vmatprep.subr.bf16.mxu0 0
    %1386 = vmatpush1.bf16.msra.mxu0 0
    %1387 = vmatprep.subr.bf16.mxu0 0
    %1388 = vmatpush1.bf16.msra.mxu0 0
    %1389 = vmatprep.subr.bf16.mxu0 0
    %1390 = vmatpush1.bf16.msra.mxu0 0
    %1391 = vmatprep.subr.bf16.mxu0 0
    %1392 = vmatpush1.bf16.msra.mxu0 0
    %1393 = vmatprep.subr.bf16.mxu0 0
    %1394 = vmatpush1.bf16.msra.mxu0 0
    %1395 = vmatprep.subr.bf16.mxu0 0
    %1396 = vmatpush1.bf16.msra.mxu0 0
    %1397 = vmatprep.subr.bf16.mxu0 0
    %1398 = vmatpush1.bf16.msra.mxu0 0
    %1399 = vmatprep.subr.bf16.mxu0 0
    %1400 = vmatpush1.bf16.msra.mxu0 0
    %1401 = vmatprep.subr.bf16.mxu0 0
    %1402 = vmatpush1.bf16.msra.mxu0 0
    %1403 = vmatprep.subr.bf16.mxu0 0
    %1404 = vmatpush1.bf16.msra.mxu0 0
    %1405 = vmatprep.subr.bf16.mxu0 0
    %1406 = vmatpush1.bf16.msra.mxu0 0
    %1407 = vmatprep.subr.bf16.mxu0 0
    %1408 = vmatpush1.bf16.msra.mxu0 0
    %1409 = vmatprep.mubr.bf16.mxu0 0
    %1410 = vmatmul.mubr.bf16.gmra.mrb[0].mxu0 %v1366
    %v1411 = vpop.f32.mrb[0].mxu0
    %v1412 = vadd.f32 0.0, %v1411
    %v1413 = vpop.f32.mrb[0].mxu0
    %v1414 = vpop.f32.mrb[0].mxu0
    %v1415 = vadd.f32 0.0, %v1414
    %v1416 = vpop.f32.mrb[0].mxu0
    %1417 = vmatprep.mubr.bf16.mxu0 0
    %1418 = vmatmul.mubr.bf16.gmra.mrb[0].mxu0 %v1369
    %v1419 = vpop.f32.mrb[0].mxu0
    %v1420 = vadd.f32 0.0, %v1419
    %v1421 = vpop.f32.mrb[0].mxu0
    %v1422 = vpop.f32.mrb[0].mxu0
    %v1423 = vadd.f32 0.0, %v1422
    %v1424 = vpop.f32.mrb[0].mxu0
    %1425 = vmatprep.mubr.bf16.mxu0 0
    %1426 = vmatmul.mubr.bf16.gmra.mrb[0].mxu0 %v1372
    %v1427 = vpop.f32.mrb[0].mxu0
    %v1428 = vadd.f32 0.0, %v1427
    %v1429 = vpop.f32.mrb[0].mxu0
    %v1430 = vpop.f32.mrb[0].mxu0
    %v1431 = vadd.f32 0.0, %v1430
    %v1432 = vpop.f32.mrb[0].mxu0
    %1433 = vmatprep.mubr.bf16.mxu0 0
    %1434 = vmatmul.mubr.bf16.gmra.mrb[0].mxu0 %v1375
    %v1435 = vpop.f32.mrb[0].mxu0
    %v1436 = vadd.f32 0.0, %v1435
    %v1437 = vpop.f32.mrb[0].mxu0
    %v1438 = vpop.f32.mrb[0].mxu0
    %v1439 = vadd.f32 0.0, %v1438
    %v1440 = vpop.f32.mrb[0].mxu0
    %1441 = vdwg.mxu0
    %v1442 = vpack.c.bf16 %v1415, %v1412
    %v1443 = vpack.c.bf16 %v1423, %v1420
    %v1444 = vpack.c.bf16 %v1431, %v1428
    %v1445 = vpack.c.bf16 %v1439, %v1436
    %1450 = vrot.lane.b32.xlu0 %v1442, 32
    %v1451 = vpop.permute.xlu0 %1450
    %1452 = vrot.lane.b32.xlu0 %v1443, 32
    %v1453 = vpop.permute.xlu0 %1452
    %1454 = vrot.lane.b32.xlu0 %v1444, 32
    %v1455 = vpop.permute.xlu0 %1454
    %1456 = vrot.lane.b32.xlu0 %v1445, 32
    %v1457 = vpop.permute.xlu0 %1456
    %vm1462 = vcmask 392448
    %1463 = vst.msk [vmem:[#allocation3] sm:$0xff] %vm1462, %v1451
    %1464 = vst.msk [vmem:[#allocation3 + $0x8] sm:$0xff] %vm1462, %v1453
    %1465 = vst.msk [vmem:[#allocation3 + $0x10] sm:$0xff] %vm1462, %v1455
    %1466 = vst.msk [vmem:[#allocation3 + $0x18] sm:$0xff] %vm1462, %v1457
    %s1467 = scalar_lea.vmem %s5, 192
    %v1468 = vld [vmem:[%s1467] sm:$0xff]
    %v1469 = vld [vmem:[%s1467 + $0x8] sm:$0xff]
    %v1470 = vld [vmem:[%s1467 + $0x10] sm:$0xff]
    %v1471 = vld [vmem:[%s1467 + $0x18] sm:$0xff]
    %v1472 = vld [vmem:[%s1467 + $0x20] sm:$0xff]
    %v1473 = vld [vmem:[%s1467 + $0x28] sm:$0xff]
    %v1474 = vld [vmem:[%s1467 + $0x30] sm:$0xff]
    %v1475 = vld [vmem:[%s1467 + $0x38] sm:$0xff]
    %1476 = vrot.lane.b32.xlu0 %v528, 80
    %v1477 = vpop.permute.xlu0 %1476
    %1478 = vrot.lane.b32.xlu0 %v530, 80
    %v1479 = vpop.permute.xlu0 %1478
    %1480 = vrot.lane.b32.xlu0 %v532, 80
    %v1481 = vpop.permute.xlu0 %1480
    %1482 = vrot.lane.b32.xlu0 %v534, 80
    %v1483 = vpop.permute.xlu0 %1482
    %1484 = vrot.lane.b32.xlu0 %v528, 16
    %v1485 = vpop.permute.xlu0 %1484
    %1486 = vrot.lane.b32.xlu0 %v530, 16
    %v1487 = vpop.permute.xlu0 %1486
    %1488 = vrot.lane.b32.xlu0 %v532, 16
    %v1489 = vpop.permute.xlu0 %1488
    %1490 = vrot.lane.b32.xlu0 %v534, 16
    %v1491 = vpop.permute.xlu0 %1490
    %v1493 = vsel %vm556, %v1477, 0
    %v1496 = vsel %vm556, %v1479, 0
    %v1499 = vsel %vm556, %v1481, 0
    %v1502 = vsel %vm556, %v1483, 0
    %v1505 = vsel %vm556, %v1485, 0
    %v1508 = vsel %vm556, %v1487, 0
    %v1511 = vsel %vm556, %v1489, 0
    %v1514 = vsel %vm556, %v1491, 0
    %1516 = vmatprep.subr.bf16.mxu0 0
    %1517 = vmatpush1.bf16.xpose.msra.mxu0 %v1505
    %1518 = vmatprep.subr.bf16.mxu0 0
    %1519 = vmatpush1.bf16.xpose.msra.mxu0 %v1508
    %1520 = vmatprep.subr.bf16.mxu0 0
    %1521 = vmatpush1.bf16.xpose.msra.mxu0 %v1511
    %1522 = vmatprep.subr.bf16.mxu0 0
    %1523 = vmatpush1.bf16.xpose.msra.mxu0 %v1514
    %1524 = vmatprep.subr.bf16.mxu0 0
    %1525 = vmatpush1.bf16.xpose.msra.mxu0 0
    %1526 = vmatprep.subr.bf16.mxu0 0
    %1527 = vmatpush1.bf16.xpose.msra.mxu0 0
    %1528 = vmatprep.subr.bf16.mxu0 0
    %1529 = vmatpush1.bf16.xpose.msra.mxu0 0
    %1530 = vmatprep.subr.bf16.mxu0 0
    %1531 = vmatpush1.bf16.xpose.msra.mxu0 0
    %1532 = vmatprep.subr.bf16.mxu0 0
    %1533 = vmatpush1.bf16.xpose.msra.mxu0 0
    %1534 = vmatprep.subr.bf16.mxu0 0
    %1535 = vmatpush1.bf16.xpose.msra.mxu0 0
    %1536 = vmatprep.subr.bf16.mxu0 0
    %1537 = vmatpush1.bf16.xpose.msra.mxu0 0
    %1538 = vmatprep.subr.bf16.mxu0 0
    %1539 = vmatpush1.bf16.xpose.msra.mxu0 0
    %1540 = vmatprep.subr.bf16.mxu0 0
    %1541 = vmatpush1.bf16.xpose.msra.mxu0 0
    %1542 = vmatprep.subr.bf16.mxu0 0
    %1543 = vmatpush1.bf16.xpose.msra.mxu0 0
    %1544 = vmatprep.subr.bf16.mxu0 0
    %1545 = vmatpush1.bf16.xpose.msra.mxu0 0
    %1546 = vmatprep.subr.bf16.mxu0 0
    %1547 = vmatpush1.bf16.xpose.msra.mxu0 0
    %1548 = vmatprep.mubr.bf16.mxu0 0
    %1549 = vmatmul.mubr.bf16.gmra.mrb[0].mxu0 %v1493
    %v1550 = vpop.f32.mrb[0].mxu0
    %v1551 = vadd.f32 %v1468, %v1550
    %v1552 = vpop.f32.mrb[0].mxu0
    %v1553 = vpop.f32.mrb[0].mxu0
    %v1554 = vadd.f32 %v1469, %v1553
    %v1555 = vpop.f32.mrb[0].mxu0
    %1556 = vmatprep.mubr.bf16.mxu0 0
    %1557 = vmatmul.mubr.bf16.gmra.mrb[0].mxu0 %v1496
    %v1558 = vpop.f32.mrb[0].mxu0
    %v1559 = vadd.f32 %v1470, %v1558
    %v1560 = vpop.f32.mrb[0].mxu0
    %v1561 = vpop.f32.mrb[0].mxu0
    %v1562 = vadd.f32 %v1471, %v1561
    %v1563 = vpop.f32.mrb[0].mxu0
    %1564 = vmatprep.mubr.bf16.mxu0 0
    %1565 = vmatmul.mubr.bf16.gmra.mrb[0].mxu0 %v1499
    %v1566 = vpop.f32.mrb[0].mxu0
    %v1567 = vadd.f32 %v1472, %v1566
    %v1568 = vpop.f32.mrb[0].mxu0
    %v1569 = vpop.f32.mrb[0].mxu0
    %v1570 = vadd.f32 %v1473, %v1569
    %v1571 = vpop.f32.mrb[0].mxu0
    %1572 = vmatprep.mubr.bf16.mxu0 0
    %1573 = vmatmul.mubr.bf16.gmra.mrb[0].mxu0 %v1502
    %v1574 = vpop.f32.mrb[0].mxu0
    %v1575 = vadd.f32 %v1474, %v1574
    %v1576 = vpop.f32.mrb[0].mxu0
    %v1577 = vpop.f32.mrb[0].mxu0
    %v1578 = vadd.f32 %v1475, %v1577
    %v1579 = vpop.f32.mrb[0].mxu0
    %1580 = vdwg.mxu0
    %v1581 = vsel %vm486, %v1551, -inf
    %1582 = vmax.xlane.f32.xlu0 %v1581
    %v1583 = vpop.xlane.xlu0 %1582
    %v1584 = vsel %vm486, %v1554, -inf
    %1585 = vmax.xlane.f32.xlu0 %v1584
    %v1586 = vpop.xlane.xlu0 %1585
    %v1587 = vsel %vm486, %v1559, -inf
    %1588 = vmax.xlane.f32.xlu0 %v1587
    %v1589 = vpop.xlane.xlu0 %1588
    %v1590 = vsel %vm486, %v1562, -inf
    %1591 = vmax.xlane.f32.xlu0 %v1590
    %v1592 = vpop.xlane.xlu0 %1591
    %v1593 = vsel %vm486, %v1567, -inf
    %1594 = vmax.xlane.f32.xlu0 %v1593
    %v1595 = vpop.xlane.xlu0 %1594
    %v1596 = vsel %vm486, %v1570, -inf
    %1597 = vmax.xlane.f32.xlu0 %v1596
    %v1598 = vpop.xlane.xlu0 %1597
    %v1599 = vsel %vm486, %v1575, -inf
    %1600 = vmax.xlane.f32.xlu0 %v1599
    %v1601 = vpop.xlane.xlu0 %1600
    %v1602 = vsel %vm486, %v1578, -inf
    %1603 = vmax.xlane.f32.xlu0 %v1602
    %v1604 = vpop.xlane.xlu0 %1603
    %v1605 = vsub.f32 %v1551, %v1583
    %v1606 = vsub.f32 %v1554, %v1586
    %v1607 = vsub.f32 %v1559, %v1589
    %v1608 = vsub.f32 %v1562, %v1592
    %v1609 = vsub.f32 %v1567, %v1595
    %v1610 = vsub.f32 %v1570, %v1598
    %v1611 = vsub.f32 %v1575, %v1601
    %v1612 = vsub.f32 %v1578, %v1604
    %v1613 = vmul.f32 %v1605, 1.442695
    %v1614 = vpow.pop %v1613
    %v1615 = vmul.f32 %v1606, 1.442695
    %v1616 = vpow.pop %v1615
    %v1617 = vmul.f32 %v1607, 1.442695
    %v1618 = vpow.pop %v1617
    %v1619 = vmul.f32 %v1608, 1.442695
    %v1620 = vpow.pop %v1619
    %v1621 = vmul.f32 %v1609, 1.442695
    %v1622 = vpow.pop %v1621
    %v1623 = vmul.f32 %v1610, 1.442695
    %v1624 = vpow.pop %v1623
    %v1625 = vmul.f32 %v1611, 1.442695
    %v1626 = vpow.pop %v1625
    %v1627 = vmul.f32 %v1612, 1.442695
    %v1628 = vpow.pop %v1627
    %v1629 = vsel %vm486, %v1614, 0.0
    %1630 = vadd.xlane.f32.xlu0 %v1629
    %v1631 = vpop.xlane.xlu0 %1630
    %v1632 = vsel %vm486, %v1616, 0.0
    %1633 = vadd.xlane.f32.xlu0 %v1632
    %v1634 = vpop.xlane.xlu0 %1633
    %v1635 = vsel %vm486, %v1618, 0.0
    %1636 = vadd.xlane.f32.xlu0 %v1635
    %v1637 = vpop.xlane.xlu0 %1636
    %v1638 = vsel %vm486, %v1620, 0.0
    %1639 = vadd.xlane.f32.xlu0 %v1638
    %v1640 = vpop.xlane.xlu0 %1639
    %v1641 = vsel %vm486, %v1622, 0.0
    %1642 = vadd.xlane.f32.xlu0 %v1641
    %v1643 = vpop.xlane.xlu0 %1642
    %v1644 = vsel %vm486, %v1624, 0.0
    %1645 = vadd.xlane.f32.xlu0 %v1644
    %v1646 = vpop.xlane.xlu0 %1645
    %v1647 = vsel %vm486, %v1626, 0.0
    %1648 = vadd.xlane.f32.xlu0 %v1647
    %v1649 = vpop.xlane.xlu0 %1648
    %v1650 = vsel %vm486, %v1628, 0.0
    %1651 = vadd.xlane.f32.xlu0 %v1650
    %v1652 = vpop.xlane.xlu0 %1651
    %v1653 = vrcp.pop %v1631
    %v1654 = vrcp.pop %v1634
    %v1655 = vrcp.pop %v1637
    %v1656 = vrcp.pop %v1640
    %v1657 = vrcp.pop %v1643
    %v1658 = vrcp.pop %v1646
    %v1659 = vrcp.pop %v1649
    %v1660 = vrcp.pop %v1652
    %v1661 = vmul.f32 %v1614, %v1653
    %v1662 = vmul.f32 %v1616, %v1654
    %v1663 = vmul.f32 %v1618, %v1655
    %v1664 = vmul.f32 %v1620, %v1656
    %v1665 = vmul.f32 %v1622, %v1657
    %v1666 = vmul.f32 %v1624, %v1658
    %v1667 = vmul.f32 %v1626, %v1659
    %v1668 = vmul.f32 %v1628, %v1660
    %v1669 = vpack.c.bf16 %v1662, %v1661
    %v1670 = vpack.c.bf16 %v1664, %v1663
    %v1671 = vpack.c.bf16 %v1666, %v1665
    %v1672 = vpack.c.bf16 %v1668, %v1667
    %1673 = vrot.lane.b32.xlu0 %v529, 80
    %v1674 = vpop.permute.xlu0 %1673
    %1675 = vrot.lane.b32.xlu0 %v531, 80
    %v1676 = vpop.permute.xlu0 %1675
    %1677 = vrot.lane.b32.xlu0 %v533, 80
    %v1678 = vpop.permute.xlu0 %1677
    %1679 = vrot.lane.b32.xlu0 %v535, 80
    %v1680 = vpop.permute.xlu0 %1679
    %v1686 = vsel %vm486, %v1669, 0
    %v1689 = vsel %vm486, %v1670, 0
    %v1692 = vsel %vm486, %v1671, 0
    %v1695 = vsel %vm486, %v1672, 0
    %1697 = vmatprep.subr.bf16.mxu0 0
    %1698 = vmatpush1.bf16.msra.mxu0 %v1674
    %1699 = vmatprep.subr.bf16.mxu0 0
    %1700 = vmatpush1.bf16.msra.mxu0 %v1676
    %1701 = vmatprep.subr.bf16.mxu0 0
    %1702 = vmatpush1.bf16.msra.mxu0 %v1678
    %1703 = vmatprep.subr.bf16.mxu0 0
    %1704 = vmatpush1.bf16.msra.mxu0 %v1680
    %1705 = vmatprep.subr.bf16.mxu0 0
    %1706 = vmatpush1.bf16.msra.mxu0 0
    %1707 = vmatprep.subr.bf16.mxu0 0
    %1708 = vmatpush1.bf16.msra.mxu0 0
    %1709 = vmatprep.subr.bf16.mxu0 0
    %1710 = vmatpush1.bf16.msra.mxu0 0
    %1711 = vmatprep.subr.bf16.mxu0 0
    %1712 = vmatpush1.bf16.msra.mxu0 0
    %1713 = vmatprep.subr.bf16.mxu0 0
    %1714 = vmatpush1.bf16.msra.mxu0 0
    %1715 = vmatprep.subr.bf16.mxu0 0
    %1716 = vmatpush1.bf16.msra.mxu0 0
    %1717 = vmatprep.subr.bf16.mxu0 0
    %1718 = vmatpush1.bf16.msra.mxu0 0
    %1719 = vmatprep.subr.bf16.mxu0 0
    %1720 = vmatpush1.bf16.msra.mxu0 0
    %1721 = vmatprep.subr.bf16.mxu0 0
    %1722 = vmatpush1.bf16.msra.mxu0 0
    %1723 = vmatprep.subr.bf16.mxu0 0
    %1724 = vmatpush1.bf16.msra.mxu0 0
    %1725 = vmatprep.subr.bf16.mxu0 0
    %1726 = vmatpush1.bf16.msra.mxu0 0
    %1727 = vmatprep.subr.bf16.mxu0 0
    %1728 = vmatpush1.bf16.msra.mxu0 0
    %1729 = vmatprep.mubr.bf16.mxu0 0
    %1730 = vmatmul.mubr.bf16.gmra.mrb[0].mxu0 %v1686
    %v1731 = vpop.f32.mrb[0].mxu0
    %v1732 = vadd.f32 0.0, %v1731
    %v1733 = vpop.f32.mrb[0].mxu0
    %v1734 = vpop.f32.mrb[0].mxu0
    %v1735 = vadd.f32 0.0, %v1734
    %v1736 = vpop.f32.mrb[0].mxu0
    %1737 = vmatprep.mubr.bf16.mxu0 0
    %1738 = vmatmul.mubr.bf16.gmra.mrb[0].mxu0 %v1689
    %v1739 = vpop.f32.mrb[0].mxu0
    %v1740 = vadd.f32 0.0, %v1739
    %v1741 = vpop.f32.mrb[0].mxu0
    %v1742 = vpop.f32.mrb[0].mxu0
    %v1743 = vadd.f32 0.0, %v1742
    %v1744 = vpop.f32.mrb[0].mxu0
    %1745 = vmatprep.mubr.bf16.mxu0 0
    %1746 = vmatmul.mubr.bf16.gmra.mrb[0].mxu0 %v1692
    %v1747 = vpop.f32.mrb[0].mxu0
    %v1748 = vadd.f32 0.0, %v1747
    %v1749 = vpop.f32.mrb[0].mxu0
    %v1750 = vpop.f32.mrb[0].mxu0
    %v1751 = vadd.f32 0.0, %v1750
    %v1752 = vpop.f32.mrb[0].mxu0
    %1753 = vmatprep.mubr.bf16.mxu0 0
    %1754 = vmatmul.mubr.bf16.gmra.mrb[0].mxu0 %v1695
    %v1755 = vpop.f32.mrb[0].mxu0
    %v1756 = vadd.f32 0.0, %v1755
    %v1757 = vpop.f32.mrb[0].mxu0
    %v1758 = vpop.f32.mrb[0].mxu0
    %v1759 = vadd.f32 0.0, %v1758
    %v1760 = vpop.f32.mrb[0].mxu0
    %1761 = vdwg.mxu0
    %v1762 = vpack.c.bf16 %v1735, %v1732
    %v1763 = vpack.c.bf16 %v1743, %v1740
    %v1764 = vpack.c.bf16 %v1751, %v1748
    %v1765 = vpack.c.bf16 %v1759, %v1756
    %1770 = vrot.lane.b32.xlu0 %v1762, 48
    %v1771 = vpop.permute.xlu0 %1770
    %1772 = vrot.lane.b32.xlu0 %v1763, 48
    %v1773 = vpop.permute.xlu0 %1772
    %1774 = vrot.lane.b32.xlu0 %v1764, 48
    %v1775 = vpop.permute.xlu0 %1774
    %1776 = vrot.lane.b32.xlu0 %v1765, 48
    %v1777 = vpop.permute.xlu0 %1776
    %vm1782 = vcmask 523648
    %1783 = vst.msk [vmem:[#allocation3] sm:$0xff] %vm1782, %v1771
    %1784 = vst.msk [vmem:[#allocation3 + $0x8] sm:$0xff] %vm1782, %v1773
    %1785 = vst.msk [vmem:[#allocation3 + $0x10] sm:$0xff] %vm1782, %v1775
    %1786 = vst.msk [vmem:[#allocation3 + $0x18] sm:$0xff] %vm1782, %v1777
    %v1787 = vld [vmem:[#allocation3] sm:$0xff]
    %v1788 = vld [vmem:[#allocation3 + $0x8] sm:$0xff]
    %v1789 = vld [vmem:[#allocation3 + $0x10] sm:$0xff]
    %v1790 = vld [vmem:[#allocation3 + $0x18] sm:$0xff]
    %v1791 = vld [vmem:[%s3] sm:$0xf]
    %v1792 = vld [vmem:[%s3 + $0x4] sm:$0xf]
    %v1793 = vld [vmem:[%s3 + $0x8] sm:$0xf]
    %v1794 = vld [vmem:[%s3 + $0xc] sm:$0xf]
    %v1795 = vld [vmem:[%s3 + $0x10] sm:$0xf]
    %v1796 = vld [vmem:[%s3 + $0x14] sm:$0xf]
    %v1797 = vld [vmem:[%s3 + $0x18] sm:$0xf]
    %v1798 = vld [vmem:[%s3 + $0x1c] sm:$0xf]
    %v1800 = vlaneseq
    %v1801 = vshrl.u32 %v1800, 7
    %v1802 = vsub.s32 0, %v1801
    %v1803 = vrot.slane %v518, %v1802
    %v1813 = vunpack.c.l.b16 %v1791
    %v1814 = vunpack.c.l.b16 %v1792
    %v1815 = vunpack.c.l.b16 %v1793
    %v1816 = vunpack.c.l.b16 %v1794
    %v1817 = vunpack.c.l.b16 %v1795
    %v1818 = vunpack.c.l.b16 %v1796
    %v1819 = vunpack.c.l.b16 %v1797
    %v1820 = vunpack.c.l.b16 %v1798
    %v1821 = vpack.c.b16 %v1814, %v1813
    %v1822 = vpack.c.b16 %v1816, %v1815
    %v1823 = vpack.c.b16 %v1818, %v1817
    %v1824 = vpack.c.b16 %v1820, %v1819
    %v1830 = vsel %vm486, %v1787, 0
    %v1833 = vsel %vm486, %v1788, 0
    %v1836 = vsel %vm486, %v1789, 0
    %v1839 = vsel %vm486, %v1790, 0
    %1841 = vmatprep.subr.bf16.mxu0 0
    %1842 = vmatpush1.bf16.msra.mxu0 %v1821
    %1843 = vmatprep.subr.bf16.mxu0 0
    %1844 = vmatpush1.bf16.msra.mxu0 %v1822
    %1845 = vmatprep.subr.bf16.mxu0 0
    %1846 = vmatpush1.bf16.msra.mxu0 %v1823
    %1847 = vmatprep.subr.bf16.mxu0 0
    %1848 = vmatpush1.bf16.msra.mxu0 %v1824
    %1849 = vmatprep.subr.bf16.mxu0 0
    %1850 = vmatpush1.bf16.msra.mxu0 0
    %1851 = vmatprep.subr.bf16.mxu0 0
    %1852 = vmatpush1.bf16.msra.mxu0 0
    %1853 = vmatprep.subr.bf16.mxu0 0
    %1854 = vmatpush1.bf16.msra.mxu0 0
    %1855 = vmatprep.subr.bf16.mxu0 0
    %1856 = vmatpush1.bf16.msra.mxu0 0
    %1857 = vmatprep.subr.bf16.mxu0 0
    %1858 = vmatpush1.bf16.msra.mxu0 0
    %1859 = vmatprep.subr.bf16.mxu0 0
    %1860 = vmatpush1.bf16.msra.mxu0 0
    %1861 = vmatprep.subr.bf16.mxu0 0
    %1862 = vmatpush1.bf16.msra.mxu0 0
    %1863 = vmatprep.subr.bf16.mxu0 0
    %1864 = vmatpush1.bf16.msra.mxu0 0
    %1865 = vmatprep.subr.bf16.mxu0 0
    %1866 = vmatpush1.bf16.msra.mxu0 0
    %1867 = vmatprep.subr.bf16.mxu0 0
    %1868 = vmatpush1.bf16.msra.mxu0 0
    %1869 = vmatprep.subr.bf16.mxu0 0
    %1870 = vmatpush1.bf16.msra.mxu0 0
    %1871 = vmatprep.subr.bf16.mxu0 0
    %1872 = vmatpush1.bf16.msra.mxu0 0
    %1873 = vmatprep.mubr.bf16.mxu0 0
    %1874 = vmatmul.mubr.bf16.gmra.mrb[0].mxu0 %v1830
    %v1875 = vpop.f32.mrb[0].mxu0
    %v1876 = vadd.f32 %v1803, %v1875
    %v1877 = vpop.f32.mrb[0].mxu0
    %v1878 = vpop.f32.mrb[0].mxu0
    %v1879 = vadd.f32 %v1803, %v1878
    %v1880 = vpop.f32.mrb[0].mxu0
    %1881 = vmatprep.mubr.bf16.mxu0 0
    %1882 = vmatmul.mubr.bf16.gmra.mrb[0].mxu0 %v1833
    %v1883 = vpop.f32.mrb[0].mxu0
    %v1884 = vadd.f32 %v1803, %v1883
    %v1885 = vpop.f32.mrb[0].mxu0
    %v1886 = vpop.f32.mrb[0].mxu0
    %v1887 = vadd.f32 %v1803, %v1886
    %v1888 = vpop.f32.mrb[0].mxu0
    %1889 = vmatprep.mubr.bf16.mxu0 0
    %1890 = vmatmul.mubr.bf16.gmra.mrb[0].mxu0 %v1836
    %v1891 = vpop.f32.mrb[0].mxu0
    %v1892 = vadd.f32 %v1803, %v1891
    %v1893 = vpop.f32.mrb[0].mxu0
    %v1894 = vpop.f32.mrb[0].mxu0
    %v1895 = vadd.f32 %v1803, %v1894
    %v1896 = vpop.f32.mrb[0].mxu0
    %1897 = vmatprep.mubr.bf16.mxu0 0
    %1898 = vmatmul.mubr.bf16.gmra.mrb[0].mxu0 %v1839
    %v1899 = vpop.f32.mrb[0].mxu0
    %v1900 = vadd.f32 %v1803, %v1899
    %v1901 = vpop.f32.mrb[0].mxu0
    %v1902 = vpop.f32.mrb[0].mxu0
    %v1903 = vadd.f32 %v1803, %v1902
    %v1904 = vpop.f32.mrb[0].mxu0
    %1905 = vdwg.mxu0
    %v1906 = vpack.c.bf16 %v1879, %v1876
    %v1907 = vpack.c.bf16 %v1887, %v1884
    %v1908 = vpack.c.bf16 %v1895, %v1892
    %v1909 = vpack.c.bf16 %v1903, %v1900
    %v1914 = vunpack.c.l.b16 %v1906
    %v1915 = vunpack.c.h.b16 %v1906
    %v1916 = vunpack.c.l.b16 %v1907
    %v1917 = vunpack.c.h.b16 %v1907
    %v1918 = vunpack.c.l.b16 %v1908
    %v1919 = vunpack.c.h.b16 %v1908
    %v1920 = vunpack.c.l.b16 %v1909
    %v1921 = vunpack.c.h.b16 %v1909
    %v1922 = vpack.c.b16 %v1914, %v1914
    %v1923 = vpack.c.b16 %v1915, %v1915
    %v1924 = vpack.c.b16 %v1916, %v1916
    %v1925 = vpack.c.b16 %v1917, %v1917
    %v1926 = vpack.c.b16 %v1918, %v1918
    %v1927 = vpack.c.b16 %v1919, %v1919
    %v1928 = vpack.c.b16 %v1920, %v1920
    %v1929 = vpack.c.b16 %v1921, %v1921
    %s1938 = smul.addr %s525, 4
    %s1939 = scalar_lea.vmem %s6, %s1938
    %1940 = vst [vmem:[%s1939] sm:$0xf] %v1922
    %1941 = vst [vmem:[%s1939 + $0x4] sm:$0xf] %v1923
    %1942 = vst [vmem:[%s1939 + $0x8] sm:$0xf] %v1924
    %1943 = vst [vmem:[%s1939 + $0xc] sm:$0xf] %v1925
    %1944 = vst [vmem:[%s1939 + $0x10] sm:$0xf] %v1926
    %1945 = vst [vmem:[%s1939 + $0x14] sm:$0xf] %v1927
    %1946 = vst [vmem:[%s1939 + $0x18] sm:$0xf] %v1928
    %1947 = vst [vmem:[%s1939 + $0x1c] sm:$0xf] %v1929
  $region30: #{global_local_attention.1} parent=0 // loop_footer
    %s524 = sadd.s32 1, %s520
  $region31: #{global_local_attention.1} parent=0 // loop_footer_branch
    %519 = sbr.rel target = $region27
  $region32: #{global_local_attention.1} parent=0 // loop_exit
    _
  // Predicated region
  $region33: #{global_local_attention.1} parent=0 // pred_check
    _
  $region34: #{global_local_attention.1} parent=0 // pred_check_branch
    %1949 = sbr.rel (0) target = $region36
  $region35: #{global_local_attention.1} parent=0 // pred_region
    _
  $region36: #{global_local_attention.1} parent=0 // pred_fallthru
    _
  // Predicated region
  $region37: #{global_local_attention.1} parent=0 // pred_check
    _
  $region38: #{global_local_attention.1} parent=0 // pred_check_branch
    %1951 = sbr.rel (0) target = $region40
  $region39: #{global_local_attention.1} parent=0 // pred_region
    _
  $region40: #{global_local_attention.1} parent=0 // pred_fallthru
    _

</llo_original>
